<compile_context>
chip_gen: v7x
topology: tpu7x:2x2x1
jax: 0.10.0
libtpu: 0.0.40
codegen_flags: <defaults>
</compile_context>

<pallas_src>
import functools

import jax
import jax.numpy as jnp
from jax.experimental import pallas as pl
from jax.experimental.pallas import tpu as pltpu


def _dilated_conv_block_kernel(x_ref, w_ref, b_ref, o_ref, *, dilation, ksize):
    # x_ref: (cin, bh, W)        slab of bh height-rows for one batch element
    # w_ref: (cout, K*cin)       conv taps pre-stacked along the contraction axis
    # b_ref: (cout, 1)           bias
    # o_ref: (cout, bh, w_out)   corresponding output slab
    _, bh, _ = x_ref.shape
    w_out = o_ref.shape[-1]

    x = x_ref[...]  # keep native dtype; the MXU consumes it directly

    # Extract all K dilated taps once over the whole slab (lane shifts are
    # amortized over the bh rows) and stack them along the contraction axis.
    taps = [x[:, :, k * dilation: k * dilation + w_out] for k in range(ksize)]
    x_stack = jnp.concatenate(taps, axis=0)                  # (K*cin, bh, w_out)

    # Lane-concatenate the rows so the whole block is ONE MXU matmul with
    # N = bh * w_out (a multiple of 256 when w_out is 128-aligned and bh >= 2).
    x_mat = jnp.concatenate([x_stack[:, r, :] for r in range(bh)], axis=1)

    acc = jnp.dot(w_ref[...], x_mat,
                  preferred_element_type=jnp.float32)        # (cout, bh*w_out) f32
    acc = acc + b_ref[...].astype(jnp.float32)               # fused bias

    # Scatter the rows back; slices are lane-aligned when w_out % 128 == 0.
    for r in range(bh):
        o_ref[:, r, :] = acc[:, r * w_out:(r + 1) * w_out].astype(o_ref.dtype)


def _pick_block_h(H, target):
    """Largest multiple-of-8 divisor of H that is <= target, else full H."""
    if H <= target:
        return H
    bh = (target // 8) * 8
    while bh >= 8:
        if H % bh == 0:
            return bh
        bh -= 8
    return H


def dilated_1d(x, weight, bias, dilation=2, block_h=32):
    """x: (B, cin, H, W); weight: (cout, cin, 1, K); bias: (cout,).
    Returns (B, cout, H, W - dilation*(K-1)), matching
    nn.Conv2d(cin, cout, (1, K), dilation=(1, dilation))."""
    B, cin, H, W = x.shape
    cout, cin_w, kh, K = weight.shape
    assert cin_w == cin and kh == 1
    w_out = W - dilation * (K - 1)
    assert w_out > 0, "input width too small for the dilated kernel"

    bh = _pick_block_h(H, block_h)
    grid = (B, H // bh)

    # w_stack[co, k*cin + ci] = weight[co, ci, 0, k]  (matches tap stacking order).
    w_stack = jnp.transpose(weight[:, :, 0, :], (0, 2, 1)).reshape(cout, K * cin)
    b_col = bias.reshape(cout, 1)

    kernel = functools.partial(_dilated_conv_block_kernel,
                               dilation=dilation, ksize=K)

    itemsize = x.dtype.itemsize
    flops = 2 * B * H * cout * K * cin * w_out
    bytes_accessed = (B * cin * H * W * itemsize          # input read
                      + cout * K * cin * 4 + cout * 4     # weights + bias
                      + B * cout * H * w_out * itemsize)  # output write

    # VMEM budget: double-buffered input + output blocks, resident weights,
    # plus generous headroom; clamped well inside v7x's 64 MiB physical VMEM.
    blk_bytes = (cin * bh * W + cout * bh * w_out) * itemsize
    vmem_bytes = int(min(max(4 * blk_bytes + 1 << 20, 8 << 20), 32 << 20))

    out = pl.pallas_call(
        kernel,
        out_shape=jax.ShapeDtypeStruct((B, cout, H, w_out), x.dtype),
        grid=grid,
        in_specs=[
            # One (cin, bh, W) slab per step, indexed straight out of NCHW.
            pl.BlockSpec((None, cin, bh, W), lambda b, h: (b, 0, h, 0)),
            # Small weight / bias blocks: same block every step (stay resident).
            pl.BlockSpec((cout, K * cin), lambda b, h: (0, 0)),
            pl.BlockSpec((cout, 1), lambda b, h: (0, 0)),
        ],
        out_specs=pl.BlockSpec((None, cout, bh, w_out), lambda b, h: (b, 0, h, 0)),
        compiler_params=pltpu.CompilerParams(
            dimension_semantics=("parallel", "parallel"),
            vmem_limit_bytes=vmem_bytes),
        cost_estimate=pl.CostEstimate(flops=flops, transcendentals=0,
                                      bytes_accessed=bytes_accessed),
    )(x, w_stack, b_col)

    return out


def dilated_1d_ref(x, weight, bias, dilation=2):
    """Pure-JAX reference mirroring the PyTorch Conv2d forward."""
    y = jax.lax.conv_general_dilated(
        x, weight, window_strides=(1, 1), padding="VALID",
        rhs_dilation=(1, dilation),
        dimension_numbers=("NCHW", "OIHW", "NCHW"),
        precision=jax.lax.Precision.HIGHEST)
    return y + bias[None, :, None, None]


if __name__ == "__main__":
    key = jax.random.PRNGKey(0)
    B, cin, cout, H = 2, 4, 8, 16
    K, dilation = 7, 2
    W = 140                       # -> w_out = 128 (lane-dense output block)
    w_out = W - dilation * (K - 1)

    kx, kw, kb = jax.random.split(key, 3)
    x = jax.random.normal(kx, (B, cin, H, W), dtype=jnp.float32)
    # Conv2d weight (cout, cin, 1, K) and bias (cout,), deterministic synthetic.
    w = jax.random.normal(kw, (cout, cin, 1, K), dtype=jnp.float32) / jnp.sqrt(cin * K)
    b = jax.random.normal(kb, (cout,), dtype=jnp.float32) * 0.1

    # block_h=8 exercises the tiled H grid axis (grid = (B, H // 8) = (2, 2)).
    out = dilated_1d(x, w, b, dilation=dilation, block_h=8)
    out = jax.block_until_ready(out)

    ref = dilated_1d_ref(x, w, b, dilation=dilation)
    assert out.shape == (B, cout, H, w_out)
    assert jnp.allclose(out, ref, atol=2e-3, rtol=2e-3), (
        f"mismatch vs reference: max abs diff = {jnp.max(jnp.abs(out - ref))}")

    print("KERNEL_OK")
</pallas_src>

<mosaic_0001>
module attributes {stable_mosaic.version = 11 : i64} {
  func.func @_dilated_conv_block_kernel(%arg0: i32, %arg1: i32, %arg2: memref<1x4x8x140xf32, #tpu.memory_space<vmem>>, %arg3: memref<8x28xf32, #tpu.memory_space<vmem>>, %arg4: memref<8x1xf32, #tpu.memory_space<vmem>>, %arg5: memref<1x8x8x128xf32, #tpu.memory_space<vmem>>) attributes {dimension_semantics = [#tpu.dimension_semantics<parallel>, #tpu.dimension_semantics<parallel>], iteration_bounds = array<i64: 2, 2>, scalar_prefetch = 0 : i64, scratch_operands = 0 : i64, tpu.core_type = #tpu.core_type<tc>, window_params = [{transform_indices = @transform_0, window_bounds = array<i64: 1, 4, 8, 140>}, {pipeline_mode = #tpu.pipeline_mode<synchronous>, transform_indices = @transform_1, window_bounds = array<i64: 8, 28>}, {pipeline_mode = #tpu.pipeline_mode<synchronous>, transform_indices = @transform_2, window_bounds = array<i64: 8, 1>}, {transform_indices = @transform_3, window_bounds = array<i64: 1, 8, 8, 128>}]} {
    %c0 = arith.constant 0 : index
    %c0_0 = arith.constant 0 : index
    %c0_1 = arith.constant 0 : index
    %c0_2 = arith.constant 0 : index
    %0 = vector.load %arg2[%c0, %c0_0, %c0_1, %c0_2] : memref<1x4x8x140xf32, #tpu.memory_space<vmem>>, vector<1x4x8x140xf32>
    %1 = vector.shape_cast %0 : vector<1x4x8x140xf32> to vector<4x8x140xf32>
    %2 = vector.extract_strided_slice %1 {offsets = [0, 0, 0], sizes = [4, 8, 128], strides = [1, 1, 1]} : vector<4x8x140xf32> to vector<4x8x128xf32>
    %3 = vector.extract_strided_slice %1 {offsets = [0, 0, 2], sizes = [4, 8, 128], strides = [1, 1, 1]} : vector<4x8x140xf32> to vector<4x8x128xf32>
    %4 = vector.extract_strided_slice %1 {offsets = [0, 0, 4], sizes = [4, 8, 128], strides = [1, 1, 1]} : vector<4x8x140xf32> to vector<4x8x128xf32>
    %5 = vector.extract_strided_slice %1 {offsets = [0, 0, 6], sizes = [4, 8, 128], strides = [1, 1, 1]} : vector<4x8x140xf32> to vector<4x8x128xf32>
    %6 = vector.extract_strided_slice %1 {offsets = [0, 0, 8], sizes = [4, 8, 128], strides = [1, 1, 1]} : vector<4x8x140xf32> to vector<4x8x128xf32>
    %7 = vector.extract_strided_slice %1 {offsets = [0, 0, 10], sizes = [4, 8, 128], strides = [1, 1, 1]} : vector<4x8x140xf32> to vector<4x8x128xf32>
    %8 = vector.extract_strided_slice %1 {offsets = [0, 0, 12], sizes = [4, 8, 128], strides = [1, 1, 1]} : vector<4x8x140xf32> to vector<4x8x128xf32>
    %9 = tpu.concatenate %2, %3, %4, %5, %6, %7, %8 in 0 : vector<4x8x128xf32>, vector<4x8x128xf32>, vector<4x8x128xf32>, vector<4x8x128xf32>, vector<4x8x128xf32>, vector<4x8x128xf32>, vector<4x8x128xf32> -> vector<28x8x128xf32>
    %10 = vector.extract_strided_slice %9 {offsets = [0, 0, 0], sizes = [28, 1, 128], strides = [1, 1, 1]} : vector<28x8x128xf32> to vector<28x1x128xf32>
    %11 = vector.shape_cast %10 : vector<28x1x128xf32> to vector<28x128xf32>
    %12 = vector.extract_strided_slice %9 {offsets = [0, 1, 0], sizes = [28, 1, 128], strides = [1, 1, 1]} : vector<28x8x128xf32> to vector<28x1x128xf32>
    %13 = vector.shape_cast %12 : vector<28x1x128xf32> to vector<28x128xf32>
    %14 = vector.extract_strided_slice %9 {offsets = [0, 2, 0], sizes = [28, 1, 128], strides = [1, 1, 1]} : vector<28x8x128xf32> to vector<28x1x128xf32>
    %15 = vector.shape_cast %14 : vector<28x1x128xf32> to vector<28x128xf32>
    %16 = vector.extract_strided_slice %9 {offsets = [0, 3, 0], sizes = [28, 1, 128], strides = [1, 1, 1]} : vector<28x8x128xf32> to vector<28x1x128xf32>
    %17 = vector.shape_cast %16 : vector<28x1x128xf32> to vector<28x128xf32>
    %18 = vector.extract_strided_slice %9 {offsets = [0, 4, 0], sizes = [28, 1, 128], strides = [1, 1, 1]} : vector<28x8x128xf32> to vector<28x1x128xf32>
    %19 = vector.shape_cast %18 : vector<28x1x128xf32> to vector<28x128xf32>
    %20 = vector.extract_strided_slice %9 {offsets = [0, 5, 0], sizes = [28, 1, 128], strides = [1, 1, 1]} : vector<28x8x128xf32> to vector<28x1x128xf32>
    %21 = vector.shape_cast %20 : vector<28x1x128xf32> to vector<28x128xf32>
    %22 = vector.extract_strided_slice %9 {offsets = [0, 6, 0], sizes = [28, 1, 128], strides = [1, 1, 1]} : vector<28x8x128xf32> to vector<28x1x128xf32>
    %23 = vector.shape_cast %22 : vector<28x1x128xf32> to vector<28x128xf32>
    %24 = vector.extract_strided_slice %9 {offsets = [0, 7, 0], sizes = [28, 1, 128], strides = [1, 1, 1]} : vector<28x8x128xf32> to vector<28x1x128xf32>
    %25 = vector.shape_cast %24 : vector<28x1x128xf32> to vector<28x128xf32>
    %26 = tpu.concatenate %11, %13, %15, %17, %19, %21, %23, %25 in 1 : vector<28x128xf32>, vector<28x128xf32>, vector<28x128xf32>, vector<28x128xf32>, vector<28x128xf32>, vector<28x128xf32>, vector<28x128xf32>, vector<28x128xf32> -> vector<28x1024xf32>
    %c0_3 = arith.constant 0 : index
    %c0_4 = arith.constant 0 : index
    %27 = vector.load %arg3[%c0_3, %c0_4] : memref<8x28xf32, #tpu.memory_space<vmem>>, vector<8x28xf32>
    %cst = arith.constant dense<0.000000e+00> : vector<8x1024xf32>
    %28 = tpu.matmul %27, %26, %cst {dimension_numbers = #tpu.dot_dimension_numbers<[1], [0], [0], [1], [0, 0, 1, 1], [], []>} : vector<8x28xf32>, vector<28x1024xf32>, vector<8x1024xf32> -> vector<8x1024xf32>
    %c0_5 = arith.constant 0 : index
    %c0_6 = arith.constant 0 : index
    %29 = vector.load %arg4[%c0_5, %c0_6] : memref<8x1xf32, #tpu.memory_space<vmem>>, vector<8x1xf32>
    %30 = vector.broadcast %29 : vector<8x1xf32> to vector<8x1024xf32>
    %31 = arith.addf %28, %30 : vector<8x1024xf32>
    %32 = vector.extract_strided_slice %31 {offsets = [0, 0], sizes = [8, 128], strides = [1, 1]} : vector<8x1024xf32> to vector<8x128xf32>
    %c0_7 = arith.constant 0 : index
    %c0_8 = arith.constant 0 : index
    %c0_9 = arith.constant 0 : index
    %c0_10 = arith.constant 0 : index
    %33 = vector.load %arg5[%c0_7, %c0_8, %c0_9, %c0_10] : memref<1x8x8x128xf32, #tpu.memory_space<vmem>>, vector<1x8x1x128xf32>
    %34 = vector.shape_cast %33 : vector<1x8x1x128xf32> to vector<8x128xf32>
    %35 = vector.shape_cast %32 : vector<8x128xf32> to vector<1x8x1x128xf32>
    tpu.vector_store %arg5[%c0_7, %c0_8, %c0_9, %c0_10], %35 {strides = array<i32>} : memref<1x8x8x128xf32, #tpu.memory_space<vmem>>, vector<1x8x1x128xf32>,
    %36 = vector.extract_strided_slice %31 {offsets = [0, 128], sizes = [8, 128], strides = [1, 1]} : vector<8x1024xf32> to vector<8x128xf32>
    %c0_11 = arith.constant 0 : index
    %c0_12 = arith.constant 0 : index
    %c1 = arith.constant 1 : index
    %c0_13 = arith.constant 0 : index
    %37 = vector.load %arg5[%c0_11, %c0_12, %c1, %c0_13] : memref<1x8x8x128xf32, #tpu.memory_space<vmem>>, vector<1x8x1x128xf32>
    %38 = vector.shape_cast %37 : vector<1x8x1x128xf32> to vector<8x128xf32>
    %39 = vector.shape_cast %36 : vector<8x128xf32> to vector<1x8x1x128xf32>
    tpu.vector_store %arg5[%c0_11, %c0_12, %c1, %c0_13], %39 {strides = array<i32>} : memref<1x8x8x128xf32, #tpu.memory_space<vmem>>, vector<1x8x1x128xf32>,
    %40 = vector.extract_strided_slice %31 {offsets = [0, 256], sizes = [8, 128], strides = [1, 1]} : vector<8x1024xf32> to vector<8x128xf32>
    %c0_14 = arith.constant 0 : index
    %c0_15 = arith.constant 0 : index
    %c2 = arith.constant 2 : index
    %c0_16 = arith.constant 0 : index
    %41 = vector.load %arg5[%c0_14, %c0_15, %c2, %c0_16] : memref<1x8x8x128xf32, #tpu.memory_space<vmem>>, vector<1x8x1x128xf32>
    %42 = vector.shape_cast %41 : vector<1x8x1x128xf32> to vector<8x128xf32>
    %43 = vector.shape_cast %40 : vector<8x128xf32> to vector<1x8x1x128xf32>
    tpu.vector_store %arg5[%c0_14, %c0_15, %c2, %c0_16], %43 {strides = array<i32>} : memref<1x8x8x128xf32, #tpu.memory_space<vmem>>, vector<1x8x1x128xf32>,
    %44 = vector.extract_strided_slice %31 {offsets = [0, 384], sizes = [8, 128], strides = [1, 1]} : vector<8x1024xf32> to vector<8x128xf32>
    %c0_17 = arith.constant 0 : index
    %c0_18 = arith.constant 0 : index
    %c3 = arith.constant 3 : index
    %c0_19 = arith.constant 0 : index
    %45 = vector.load %arg5[%c0_17, %c0_18, %c3, %c0_19] : memref<1x8x8x128xf32, #tpu.memory_space<vmem>>, vector<1x8x1x128xf32>
    %46 = vector.shape_cast %45 : vector<1x8x1x128xf32> to vector<8x128xf32>
    %47 = vector.shape_cast %44 : vector<8x128xf32> to vector<1x8x1x128xf32>
    tpu.vector_store %arg5[%c0_17, %c0_18, %c3, %c0_19], %47 {strides = array<i32>} : memref<1x8x8x128xf32, #tpu.memory_space<vmem>>, vector<1x8x1x128xf32>,
    %48 = vector.extract_strided_slice %31 {offsets = [0, 512], sizes = [8, 128], strides = [1, 1]} : vector<8x1024xf32> to vector<8x128xf32>
    %c0_20 = arith.constant 0 : index
    %c0_21 = arith.constant 0 : index
    %c4 = arith.constant 4 : index
    %c0_22 = arith.constant 0 : index
    %49 = vector.load %arg5[%c0_20, %c0_21, %c4, %c0_22] : memref<1x8x8x128xf32, #tpu.memory_space<vmem>>, vector<1x8x1x128xf32>
    %50 = vector.shape_cast %49 : vector<1x8x1x128xf32> to vector<8x128xf32>
    %51 = vector.shape_cast %48 : vector<8x128xf32> to vector<1x8x1x128xf32>
    tpu.vector_store %arg5[%c0_20, %c0_21, %c4, %c0_22], %51 {strides = array<i32>} : memref<1x8x8x128xf32, #tpu.memory_space<vmem>>, vector<1x8x1x128xf32>,
    %52 = vector.extract_strided_slice %31 {offsets = [0, 640], sizes = [8, 128], strides = [1, 1]} : vector<8x1024xf32> to vector<8x128xf32>
    %c0_23 = arith.constant 0 : index
    %c0_24 = arith.constant 0 : index
    %c5 = arith.constant 5 : index
    %c0_25 = arith.constant 0 : index
    %53 = vector.load %arg5[%c0_23, %c0_24, %c5, %c0_25] : memref<1x8x8x128xf32, #tpu.memory_space<vmem>>, vector<1x8x1x128xf32>
    %54 = vector.shape_cast %53 : vector<1x8x1x128xf32> to vector<8x128xf32>
    %55 = vector.shape_cast %52 : vector<8x128xf32> to vector<1x8x1x128xf32>
    tpu.vector_store %arg5[%c0_23, %c0_24, %c5, %c0_25], %55 {strides = array<i32>} : memref<1x8x8x128xf32, #tpu.memory_space<vmem>>, vector<1x8x1x128xf32>,
    %56 = vector.extract_strided_slice %31 {offsets = [0, 768], sizes = [8, 128], strides = [1, 1]} : vector<8x1024xf32> to vector<8x128xf32>
    %c0_26 = arith.constant 0 : index
    %c0_27 = arith.constant 0 : index
    %c6 = arith.constant 6 : index
    %c0_28 = arith.constant 0 : index
    %57 = vector.load %arg5[%c0_26, %c0_27, %c6, %c0_28] : memref<1x8x8x128xf32, #tpu.memory_space<vmem>>, vector<1x8x1x128xf32>
    %58 = vector.shape_cast %57 : vector<1x8x1x128xf32> to vector<8x128xf32>
    %59 = vector.shape_cast %56 : vector<8x128xf32> to vector<1x8x1x128xf32>
    tpu.vector_store %arg5[%c0_26, %c0_27, %c6, %c0_28], %59 {strides = array<i32>} : memref<1x8x8x128xf32, #tpu.memory_space<vmem>>, vector<1x8x1x128xf32>,
    %60 = vector.extract_strided_slice %31 {offsets = [0, 896], sizes = [8, 128], strides = [1, 1]} : vector<8x1024xf32> to vector<8x128xf32>
    %c0_29 = arith.constant 0 : index
    %c0_30 = arith.constant 0 : index
    %c7 = arith.constant 7 : index
    %c0_31 = arith.constant 0 : index
    %61 = vector.load %arg5[%c0_29, %c0_30, %c7, %c0_31] : memref<1x8x8x128xf32, #tpu.memory_space<vmem>>, vector<1x8x1x128xf32>
    %62 = vector.shape_cast %61 : vector<1x8x1x128xf32> to vector<8x128xf32>
    %63 = vector.shape_cast %60 : vector<8x128xf32> to vector<1x8x1x128xf32>
    tpu.vector_store %arg5[%c0_29, %c0_30, %c7, %c0_31], %63 {strides = array<i32>} : memref<1x8x8x128xf32, #tpu.memory_space<vmem>>, vector<1x8x1x128xf32>,
    return
  }
  func.func @transform_0(%arg0: i32, %arg1: i32) -> (i32, i32, i32, i32) {
    %c0_i32 = arith.constant 0 : i32
    %c0_i32_0 = arith.constant 0 : i32
    %c0_i32_1 = arith.constant 0 : i32
    return %arg0, %c0_i32, %arg1, %c0_i32_0 : i32, i32, i32, i32
  }
  func.func @transform_1(%arg0: i32, %arg1: i32) -> (i32, i32) {
    %c0_i32 = arith.constant 0 : i32
    %c0_i32_0 = arith.constant 0 : i32
    %c0_i32_1 = arith.constant 0 : i32
    return %c0_i32, %c0_i32_0 : i32, i32
  }
  func.func @transform_2(%arg0: i32, %arg1: i32) -> (i32, i32) {
    %c0_i32 = arith.constant 0 : i32
    %c0_i32_0 = arith.constant 0 : i32
    %c0_i32_1 = arith.constant 0 : i32
    return %c0_i32, %c0_i32_0 : i32, i32
  }
  func.func @transform_3(%arg0: i32, %arg1: i32) -> (i32, i32, i32, i32) {
    %c0_i32 = arith.constant 0 : i32
    %c0_i32_0 = arith.constant 0 : i32
    %c0_i32_1 = arith.constant 0 : i32
    return %arg0, %c0_i32, %arg1, %c0_i32_0 : i32, i32, i32, i32
  }
}

</mosaic_0001>

<llo_original>
// kernel: tpu_custom_call.1
$region0: #{tpu_custom_call.1}
  #allocation0 [shape = 'u32[]', space=smem, size = 0x4, offset = 0x4, fixed_abs, tag = 'smem constant byte address 0x4 - core index']
  #allocation1 [shape = 'u32[144,128]{1,0:T(1,128)}', space=vmem, size = 0x12000, scoped, tag = 'internal scratch']
  %s0 = inlined_call_operand.hbm [shape: f32[2,4,16,140], index: 0, kind: input, shape index: {}]
  %s1 = inlined_call_operand.vmem [shape: f32[8,28], index: 1, kind: input, shape index: {}]
  %s2 = inlined_call_operand.vmem [shape: f32[8,1], index: 2, kind: input, shape index: {}]
  %s3 = inlined_call_operand.hbm [shape: f32[2,8,16,128], index: 3, kind: output, shape index: {}]
  %s4 = sld [smem:[#allocation0]]
  $region49: #{tpu_custom_call.1} parent=0
    _
  %s6 = ssub.s32 1, %s4
  %s7 = scalar_select 0, %s6, %s4
  $region1: #{tpu_custom_call.1} parent=0
    #allocation2 [shape = 'u8[65536]{0}', space=vmem, size = 0x10000, scoped, tag = 'input window, operand 0']
    #allocation3 [shape = 's32[2]{0}', space=sflag, size = 0x8, scoped, tag = 'scoped memory for tpu_custom_call.1']
    #allocation4 [shape = 's32[2]{0}', space=sflag, size = 0x8, scoped, tag = 'scoped memory for tpu_custom_call.1']
    #allocation5 [shape = 'u8[65536]{0}', space=vmem, size = 0x10000, scoped, tag = 'output window, operand 0']
    %8 = vsyncpa [#allocation3], 0
    %s9 = scalar_lea.sflag [#allocation3], 1
    %10 = vsyncpa %s9, 0
    %11 = vsyncpa [#allocation4], 0
    %s12 = scalar_lea.sflag [#allocation4], 1
    %13 = vsyncpa %s12, 0
    loop: start=0, step=1, limit=6
    $region2: #{tpu_custom_call.1} parent=1 // loop_pre_header
      _
    $region3: #{tpu_custom_call.1} parent=1 // loop_header
      %s15 = sphi 0, %s19
      %p16 = scmp.ge.s32.totalorder %s15, 6
      %s22 = sphi 0, %s34
      %s23 = sphi 0, %s30
      %s24 = sphi 0, %s22
      %s25 = sphi 0, %s23
      %s26 = sphi 0, %s24
      %s27 = sphi 0, %s25
      %s39 = sphi 0, %s41
      %s42 = sphi 0, %s39
      %s43 = sphi 0, %s42
      %s59 = sphi 0, %s43
      %s63 = sphi 0, %s63
      %s65 = sphi 0, %s63
      %s66 = sphi 0, %s65
      %s80 = sphi 0, %s66
      %s84 = sphi 0, %s84
      %s86 = sphi 0, %s84
      %s87 = sphi 0, %s86
      %s101 = sphi 0, %s87
      %s109 = sphi 0, %s111
      %s112 = sphi 0, %s109
      %s113 = sphi 0, %s112
      %s129 = sphi 0, %s113
    $region4: #{tpu_custom_call.1} parent=1 // loop_header_branch
      %18 = sbr.rel (%p16) target = $region8
    $region5: #{tpu_custom_call.1} parent=1 // loop_body
      %s20 = ssub.s32 %s15, 1
      %s21 = ssub.s32 %s15, 2
      %s28 = sadd.s32 1, %s23
      %p29 = scmp.ge.s32.totalorder %s28, 2
      %s30 = scalar_select %p29, 0, %s28
      %s31 = sadd.s32 1, %s22
      %s32 = scalar_select %p29, %s31, %s22
      %p33 = scmp.ge.s32.totalorder %s32, 2
      %s34 = scalar_select %p33, 0, %s32
      %s35 = ssub.s32 %s22, %s34
      %s36 = ssub.s32 %s23, %s30
      %s37 = sor.u32 %s35, %s36
      %p38 = scmp.eq.s32.totalorder %s37, 0
      %s40 = sadd.s32 %s39, 1
      %s41 = scalar_select %p38, %s39, %s40
      %p44 = pneg %p38
      %p45 = scmp.eq.s32.totalorder %s15, 3
      %p46 = por %p44, %p45
      %p47 = scmp.ne.s32.totalorder %s39, %s42
      %p48 = scmp.eq.s32.totalorder %s15, 0
      %p49 = por %p47, %p48
      %p50 = scmp.ne.s32.totalorder %s39, %s42
      %p51 = scmp.eq.s32.totalorder %s20, 3
      %p52 = por %p50, %p51
      %p53 = scmp.ne.s32.totalorder %s42, %s43
      %p54 = scmp.eq.s32.totalorder %s20, 0
      %p55 = por %p53, %p54
      %p56 = scmp.ne.s32.totalorder %s42, %s43
      %p57 = scmp.eq.s32.totalorder %s21, 3
      %p58 = por %p56, %p57
      %p60 = scmp.ne.s32.totalorder %s43, %s59
      %p61 = scmp.eq.s32.totalorder %s21, 0
      %p62 = por %p60, %p61
      %s64 = sadd.s32 %s63, 1
      %p67 = scmp.eq.s32.totalorder %s15, 3
      %p68 = scmp.ne.s32.totalorder %s63, %s65
      %p69 = scmp.eq.s32.totalorder %s15, 0
      %p70 = por %p68, %p69
      %p71 = scmp.ne.s32.totalorder %s63, %s65
      %p72 = scmp.eq.s32.totalorder %s20, 3
      %p73 = por %p71, %p72
      %p74 = scmp.ne.s32.totalorder %s65, %s66
      %p75 = scmp.eq.s32.totalorder %s20, 0
      %p76 = por %p74, %p75
      %p77 = scmp.ne.s32.totalorder %s65, %s66
      %p78 = scmp.eq.s32.totalorder %s21, 3
      %p79 = por %p77, %p78
      %p81 = scmp.ne.s32.totalorder %s66, %s80
      %p82 = scmp.eq.s32.totalorder %s21, 0
      %p83 = por %p81, %p82
      %s85 = sadd.s32 %s84, 1
      %p88 = scmp.eq.s32.totalorder %s15, 3
      %p89 = scmp.ne.s32.totalorder %s84, %s86
      %p90 = scmp.eq.s32.totalorder %s15, 0
      %p91 = por %p89, %p90
      %p92 = scmp.ne.s32.totalorder %s84, %s86
      %p93 = scmp.eq.s32.totalorder %s20, 3
      %p94 = por %p92, %p93
      %p95 = scmp.ne.s32.totalorder %s86, %s87
      %p96 = scmp.eq.s32.totalorder %s20, 0
      %p97 = por %p95, %p96
      %p98 = scmp.ne.s32.totalorder %s86, %s87
      %p99 = scmp.eq.s32.totalorder %s21, 3
      %p100 = por %p98, %p99
      %p102 = scmp.ne.s32.totalorder %s87, %s101
      %p103 = scmp.eq.s32.totalorder %s21, 0
      %p104 = por %p102, %p103
      %s105 = ssub.s32 %s22, %s34
      %s106 = ssub.s32 %s23, %s30
      %s107 = sor.u32 %s105, %s106
      %p108 = scmp.eq.s32.totalorder %s107, 0
      %s110 = sadd.s32 %s109, 1
      %s111 = scalar_select %p108, %s109, %s110
      %p114 = pneg %p108
      %p115 = scmp.eq.s32.totalorder %s15, 3
      %p116 = por %p114, %p115
      %p117 = scmp.ne.s32.totalorder %s109, %s112
      %p118 = scmp.eq.s32.totalorder %s15, 0
      %p119 = por %p117, %p118
      %p120 = scmp.ne.s32.totalorder %s109, %s112
      %p121 = scmp.eq.s32.totalorder %s20, 3
      %p122 = por %p120, %p121
      %p123 = scmp.ne.s32.totalorder %s112, %s113
      %p124 = scmp.eq.s32.totalorder %s20, 0
      %p125 = por %p123, %p124
      %p126 = scmp.ne.s32.totalorder %s112, %s113
      %p127 = scmp.eq.s32.totalorder %s21, 3
      %p128 = por %p126, %p127
      %p130 = scmp.ne.s32.totalorder %s113, %s129
      %p131 = scmp.eq.s32.totalorder %s21, 0
      %p132 = por %p130, %p131
      %p133 = scmp.le.s32.totalorder 1, %s15
      %p134 = scmp.lt.s32.totalorder %s15, 5
      %p135 = pnand %p133, %p134
      %p136 = pneg %p135
      // Predicated region
      $region9: #{tpu_custom_call.1} parent=5 // pred_check
        _
      $region10: #{tpu_custom_call.1} parent=5 // pred_check_branch
        %138 = sbr.rel (%p135) target = $region12
      $region11: #{tpu_custom_call.1} parent=5 // pred_region
        %s139 = ssub.s32 %s15, 1
        // Predicated region
        $region13: #{tpu_custom_call.1} parent=11 // pred_check
          %p140 = pneg %p76
        $region14: #{tpu_custom_call.1} parent=11 // pred_check_branch
          %142 = sbr.rel (%p140) target = $region16
        $region15: #{tpu_custom_call.1} parent=11 // pred_region
          _
        $region16: #{tpu_custom_call.1} parent=11 // pred_fallthru
          _
        // Predicated region
        $region17: #{tpu_custom_call.1} parent=11 // pred_check
          %p143 = pneg %p97
        $region18: #{tpu_custom_call.1} parent=11 // pred_check_branch
          %145 = sbr.rel (%p143) target = $region20
        $region19: #{tpu_custom_call.1} parent=11 // pred_region
          _
        $region20: #{tpu_custom_call.1} parent=11 // pred_fallthru
          _
      $region12: #{tpu_custom_call.1} parent=5 // pred_fallthru
        _
      %p146 = scmp.lt.s32.totalorder %s15, 4
      // Predicated region
      $region21: #{tpu_custom_call.1} parent=5 // pred_check
        %p147 = pneg %p146
      $region22: #{tpu_custom_call.1} parent=5 // pred_check_branch
        %149 = sbr.rel (%p147) target = $region24
      $region23: #{tpu_custom_call.1} parent=5 // pred_region
        // Predicated region
        $region25: #{tpu_custom_call.1} parent=23 // pred_check
          %p150 = pneg %p49
        $region26: #{tpu_custom_call.1} parent=23 // pred_check_branch
          %152 = sbr.rel (%p150) target = $region28
        $region27: #{tpu_custom_call.1} parent=23 // pred_region
          %s153 = sand.u32 %s39, 1
          %s154 = scalar_lea.sflag [#allocation3], %s153
          %s155 = sand.u32 %s39, 1
          %s156 = smul.addr %s155, 64
          %s157 = scalar_lea.vmem [#allocation2], %s156
          %s159 = ssub.s32 1024, 1024
          %160 = vsyncadd %s154, %s159
          %s161 = smul.addr %s23, 2
          %s162 = smul.addr %s22, 16
          %s163 = sadd.s32 %s161, %s162
          %s164 = smul.addr %s163, 128
          %s165 = scalar_lea.hbm %s0, %s164
          %s166 = sshll.u32 %s157, 4
          %s167 = int_to_ptr.vmem [resolvable:$true] %s166
          %172 = dma.hbm_to_vmem [thread:$0]  %s165, 1024, %s167, %s154, 512, 256, 16
        $region28: #{tpu_custom_call.1} parent=23 // pred_fallthru
          _
      $region24: #{tpu_custom_call.1} parent=5 // pred_fallthru
        _
      %p173 = scmp.le.s32.totalorder 1, %s15
      %p174 = scmp.lt.s32.totalorder %s15, 5
      %p175 = pnand %p173, %p174
      %p176 = pneg %p175
      // Predicated region
      $region29: #{tpu_custom_call.1} parent=5 // pred_check
        _
      $region30: #{tpu_custom_call.1} parent=5 // pred_check_branch
        %178 = sbr.rel (%p175) target = $region32
      $region31: #{tpu_custom_call.1} parent=5 // pred_region
        %s179 = ssub.s32 %s15, 1
        %s180 = sand.u32 %s42, 1
        %s181 = scalar_lea.sflag [#allocation3], %s180
        %s182 = sand.u32 %s42, 1
        %s183 = smul.addr %s182, 64
        %s184 = scalar_lea.vmem [#allocation2], %s183
        // Predicated region
        $region33: #{tpu_custom_call.1} parent=31 // pred_check
          %p185 = pneg %p55
        $region34: #{tpu_custom_call.1} parent=31 // pred_check_branch
          %187 = sbr.rel (%p185) target = $region36
        $region35: #{tpu_custom_call.1} parent=31 // pred_region
          %188 = dma.done %s181, 1024
        $region36: #{tpu_custom_call.1} parent=31 // pred_fallthru
          _
        %s189 = sand.u32 %s42, 1
        %s190 = scalar_lea.sflag [#allocation3], %s189
        %s191 = sand.u32 %s42, 1
        %s192 = smul.addr %s191, 64
        %s193 = scalar_lea.vmem [#allocation2], %s192
        %p194 = pneg %p55
        %p195 = pneg %p52
        %p196 = pneg %p76
        %p197 = pneg %p73
        %p198 = pneg %p97
        %p199 = pneg %p94
        %p200 = pneg %p125
        %p201 = pneg %p122
        %s202 = sand.u32 %s112, 1
        %s203 = scalar_lea.sflag [#allocation4], %s202
        %s204 = sand.u32 %s112, 1
        %s205 = smul.addr %s204, 64
        %s206 = scalar_lea.vmem [#allocation5], %s205
        %v207 = vld [vmem:[%s184] sm:$0xff]
        %v208 = vld [vmem:[%s184 + $0x8] sm:$0xff]
        %v209 = vld [vmem:[%s184 + $0x10] sm:$0xff]
        %v210 = vld [vmem:[%s184 + $0x18] sm:$0xff]
        %v211 = vld [vmem:[%s184 + $0x20] sm:$0xff]
        %v212 = vld [vmem:[%s184 + $0x28] sm:$0xff]
        %v213 = vld [vmem:[%s184 + $0x30] sm:$0xff]
        %v214 = vld [vmem:[%s184 + $0x38] sm:$0xff]
        %223 = vrot.lane.b32.xlu0 %v207, 126
        %v224 = vpop.permute.xlu0 %223
        %225 = vrot.lane.b32.xlu0 %v208, 126
        %v226 = vpop.permute.xlu0 %225
        %227 = vrot.lane.b32.xlu0 %v209, 126
        %v228 = vpop.permute.xlu0 %227
        %229 = vrot.lane.b32.xlu0 %v210, 126
        %v230 = vpop.permute.xlu0 %229
        %231 = vrot.lane.b32.xlu0 %v211, 126
        %v232 = vpop.permute.xlu0 %231
        %233 = vrot.lane.b32.xlu0 %v212, 126
        %v234 = vpop.permute.xlu0 %233
        %235 = vrot.lane.b32.xlu0 %v213, 126
        %v236 = vpop.permute.xlu0 %235
        %237 = vrot.lane.b32.xlu0 %v214, 126
        %v238 = vpop.permute.xlu0 %237
        %vm239 = vcmask 1031168
        %v240 = vsel %vm239, %v224, %v226
        %v241 = vsel %vm239, %v228, %v230
        %v242 = vsel %vm239, %v232, %v234
        %v243 = vsel %vm239, %v236, %v238
        %244 = vrot.lane.b32.xlu0 %v207, 124
        %v245 = vpop.permute.xlu0 %244
        %246 = vrot.lane.b32.xlu0 %v208, 124
        %v247 = vpop.permute.xlu0 %246
        %248 = vrot.lane.b32.xlu0 %v209, 124
        %v249 = vpop.permute.xlu0 %248
        %250 = vrot.lane.b32.xlu0 %v210, 124
        %v251 = vpop.permute.xlu0 %250
        %252 = vrot.lane.b32.xlu0 %v211, 124
        %v253 = vpop.permute.xlu0 %252
        %254 = vrot.lane.b32.xlu0 %v212, 124
        %v255 = vpop.permute.xlu0 %254
        %256 = vrot.lane.b32.xlu0 %v213, 124
        %v257 = vpop.permute.xlu0 %256
        %258 = vrot.lane.b32.xlu0 %v214, 124
        %v259 = vpop.permute.xlu0 %258
        %vm260 = vcmask 1014784
        %v261 = vsel %vm260, %v245, %v247
        %v262 = vsel %vm260, %v249, %v251
        %v263 = vsel %vm260, %v253, %v255
        %v264 = vsel %vm260, %v257, %v259
        %265 = vrot.lane.b32.xlu0 %v207, 122
        %v266 = vpop.permute.xlu0 %265
        %267 = vrot.lane.b32.xlu0 %v208, 122
        %v268 = vpop.permute.xlu0 %267
        %269 = vrot.lane.b32.xlu0 %v209, 122
        %v270 = vpop.permute.xlu0 %269
        %271 = vrot.lane.b32.xlu0 %v210, 122
        %v272 = vpop.permute.xlu0 %271
        %273 = vrot.lane.b32.xlu0 %v211, 122
        %v274 = vpop.permute.xlu0 %273
        %275 = vrot.lane.b32.xlu0 %v212, 122
        %v276 = vpop.permute.xlu0 %275
        %277 = vrot.lane.b32.xlu0 %v213, 122
        %v278 = vpop.permute.xlu0 %277
        %279 = vrot.lane.b32.xlu0 %v214, 122
        %v280 = vpop.permute.xlu0 %279
        %vm281 = vcmask 998400
        %v282 = vsel %vm281, %v266, %v268
        %v283 = vsel %vm281, %v270, %v272
        %v284 = vsel %vm281, %v274, %v276
        %v285 = vsel %vm281, %v278, %v280
        %286 = vrot.lane.b32.xlu0 %v207, 120
        %v287 = vpop.permute.xlu0 %286
        %288 = vrot.lane.b32.xlu0 %v208, 120
        %v289 = vpop.permute.xlu0 %288
        %290 = vrot.lane.b32.xlu0 %v209, 120
        %v291 = vpop.permute.xlu0 %290
        %292 = vrot.lane.b32.xlu0 %v210, 120
        %v293 = vpop.permute.xlu0 %292
        %294 = vrot.lane.b32.xlu0 %v211, 120
        %v295 = vpop.permute.xlu0 %294
        %296 = vrot.lane.b32.xlu0 %v212, 120
        %v297 = vpop.permute.xlu0 %296
        %298 = vrot.lane.b32.xlu0 %v213, 120
        %v299 = vpop.permute.xlu0 %298
        %300 = vrot.lane.b32.xlu0 %v214, 120
        %v301 = vpop.permute.xlu0 %300
        %vm302 = vcmask 982016
        %v303 = vsel %vm302, %v287, %v289
        %v304 = vsel %vm302, %v291, %v293
        %v305 = vsel %vm302, %v295, %v297
        %v306 = vsel %vm302, %v299, %v301
        %307 = vrot.lane.b32.xlu0 %v207, 118
        %v308 = vpop.permute.xlu0 %307
        %309 = vrot.lane.b32.xlu0 %v208, 118
        %v310 = vpop.permute.xlu0 %309
        %311 = vrot.lane.b32.xlu0 %v209, 118
        %v312 = vpop.permute.xlu0 %311
        %313 = vrot.lane.b32.xlu0 %v210, 118
        %v314 = vpop.permute.xlu0 %313
        %315 = vrot.lane.b32.xlu0 %v211, 118
        %v316 = vpop.permute.xlu0 %315
        %317 = vrot.lane.b32.xlu0 %v212, 118
        %v318 = vpop.permute.xlu0 %317
        %319 = vrot.lane.b32.xlu0 %v213, 118
        %v320 = vpop.permute.xlu0 %319
        %321 = vrot.lane.b32.xlu0 %v214, 118
        %v322 = vpop.permute.xlu0 %321
        %vm323 = vcmask 965632
        %v324 = vsel %vm323, %v308, %v310
        %v325 = vsel %vm323, %v312, %v314
        %v326 = vsel %vm323, %v316, %v318
        %v327 = vsel %vm323, %v320, %v322
        %328 = vrot.lane.b32.xlu0 %v207, 116
        %v329 = vpop.permute.xlu0 %328
        %330 = vrot.lane.b32.xlu0 %v208, 116
        %v331 = vpop.permute.xlu0 %330
        %332 = vrot.lane.b32.xlu0 %v209, 116
        %v333 = vpop.permute.xlu0 %332
        %334 = vrot.lane.b32.xlu0 %v210, 116
        %v335 = vpop.permute.xlu0 %334
        %336 = vrot.lane.b32.xlu0 %v211, 116
        %v337 = vpop.permute.xlu0 %336
        %338 = vrot.lane.b32.xlu0 %v212, 116
        %v339 = vpop.permute.xlu0 %338
        %340 = vrot.lane.b32.xlu0 %v213, 116
        %v341 = vpop.permute.xlu0 %340
        %342 = vrot.lane.b32.xlu0 %v214, 116
        %v343 = vpop.permute.xlu0 %342
        %vm344 = vcmask 949248
        %v345 = vsel %vm344, %v329, %v331
        %v346 = vsel %vm344, %v333, %v335
        %v347 = vsel %vm344, %v337, %v339
        %v348 = vsel %vm344, %v341, %v343
        %v349 = vrot.slane %v209, 7
        %vm350 = vcmask 1041409
        %v351 = vsel %vm350, %v349, %v207
        %v352 = vrot.slane %v211, 6
        %vm353 = vcmask 1042434
        %v354 = vsel %vm353, %v352, %v351
        %v355 = vrot.slane %v213, 5
        %vm356 = vcmask 1043459
        %v357 = vsel %vm356, %v355, %v354
        %v358 = vrot.slane %v240, 4
        %vm359 = vcmask 1044484
        %v360 = vsel %vm359, %v358, %v357
        %v361 = vrot.slane %v241, 3
        %vm362 = vcmask 1045509
        %v363 = vsel %vm362, %v361, %v360
        %v364 = vrot.slane %v242, 2
        %vm365 = vcmask 1046534
        %v366 = vsel %vm365, %v364, %v363
        %v367 = vrot.slane %v243, 1
        %vm368 = vcmask 1047559
        %v369 = vsel %vm368, %v367, %v366
        %v370 = vrot.slane %v262, 7
        %v371 = vsel %vm350, %v370, %v261
        %v372 = vrot.slane %v263, 6
        %v373 = vsel %vm353, %v372, %v371
        %v374 = vrot.slane %v264, 5
        %v375 = vsel %vm356, %v374, %v373
        %v376 = vrot.slane %v282, 4
        %v377 = vsel %vm359, %v376, %v375
        %v378 = vrot.slane %v283, 3
        %v379 = vsel %vm362, %v378, %v377
        %v380 = vrot.slane %v284, 2
        %v381 = vsel %vm365, %v380, %v379
        %v382 = vrot.slane %v285, 1
        %v383 = vsel %vm368, %v382, %v381
        %v384 = vrot.slane %v304, 7
        %v385 = vsel %vm350, %v384, %v303
        %v386 = vrot.slane %v305, 6
        %v387 = vsel %vm353, %v386, %v385
        %v388 = vrot.slane %v306, 5
        %v389 = vsel %vm356, %v388, %v387
        %v390 = vrot.slane %v324, 4
        %v391 = vsel %vm359, %v390, %v389
        %v392 = vrot.slane %v325, 3
        %v393 = vsel %vm362, %v392, %v391
        %v394 = vrot.slane %v326, 2
        %v395 = vsel %vm365, %v394, %v393
        %v396 = vrot.slane %v327, 1
        %v397 = vsel %vm368, %v396, %v395
        %v398 = vrot.slane %v346, 7
        %v399 = vsel %vm350, %v398, %v345
        %v400 = vrot.slane %v347, 6
        %v401 = vsel %vm353, %v400, %v399
        %v402 = vrot.slane %v348, 5
        %v403 = vsel %vm356, %v402, %v401
        %v407 = vrot.slane %v207, 1
        %v408 = vsel %vm350, %v209, %v407
        %v409 = vrot.slane %v211, 7
        %v410 = vsel %vm353, %v409, %v408
        %v411 = vrot.slane %v213, 6
        %v412 = vsel %vm356, %v411, %v410
        %v413 = vrot.slane %v240, 5
        %v414 = vsel %vm359, %v413, %v412
        %v415 = vrot.slane %v241, 4
        %v416 = vsel %vm362, %v415, %v414
        %v417 = vrot.slane %v242, 3
        %v418 = vsel %vm365, %v417, %v416
        %v419 = vrot.slane %v243, 2
        %v420 = vsel %vm368, %v419, %v418
        %v421 = vrot.slane %v261, 1
        %v422 = vsel %vm350, %v262, %v421
        %v423 = vrot.slane %v263, 7
        %v424 = vsel %vm353, %v423, %v422
        %v425 = vrot.slane %v264, 6
        %v426 = vsel %vm356, %v425, %v424
        %v427 = vrot.slane %v282, 5
        %v428 = vsel %vm359, %v427, %v426
        %v429 = vrot.slane %v283, 4
        %v430 = vsel %vm362, %v429, %v428
        %v431 = vrot.slane %v284, 3
        %v432 = vsel %vm365, %v431, %v430
        %v433 = vrot.slane %v285, 2
        %v434 = vsel %vm368, %v433, %v432
        %v435 = vrot.slane %v303, 1
        %v436 = vsel %vm350, %v304, %v435
        %v437 = vrot.slane %v305, 7
        %v438 = vsel %vm353, %v437, %v436
        %v439 = vrot.slane %v306, 6
        %v440 = vsel %vm356, %v439, %v438
        %v441 = vrot.slane %v324, 5
        %v442 = vsel %vm359, %v441, %v440
        %v443 = vrot.slane %v325, 4
        %v444 = vsel %vm362, %v443, %v442
        %v445 = vrot.slane %v326, 3
        %v446 = vsel %vm365, %v445, %v444
        %v447 = vrot.slane %v327, 2
        %v448 = vsel %vm368, %v447, %v446
        %v449 = vrot.slane %v345, 1
        %v450 = vsel %vm350, %v346, %v449
        %v451 = vrot.slane %v347, 7
        %v452 = vsel %vm353, %v451, %v450
        %v453 = vrot.slane %v348, 6
        %v454 = vsel %vm356, %v453, %v452
        %v458 = vrot.slane %v207, 2
        %v459 = vrot.slane %v209, 1
        %v460 = vsel %vm350, %v459, %v458
        %v461 = vsel %vm353, %v211, %v460
        %v462 = vrot.slane %v213, 7
        %v463 = vsel %vm356, %v462, %v461
        %v464 = vrot.slane %v240, 6
        %v465 = vsel %vm359, %v464, %v463
        %v466 = vrot.slane %v241, 5
        %v467 = vsel %vm362, %v466, %v465
        %v468 = vrot.slane %v242, 4
        %v469 = vsel %vm365, %v468, %v467
        %v470 = vrot.slane %v243, 3
        %v471 = vsel %vm368, %v470, %v469
        %v472 = vrot.slane %v261, 2
        %v473 = vrot.slane %v262, 1
        %v474 = vsel %vm350, %v473, %v472
        %v475 = vsel %vm353, %v263, %v474
        %v476 = vrot.slane %v264, 7
        %v477 = vsel %vm356, %v476, %v475
        %v478 = vrot.slane %v282, 6
        %v479 = vsel %vm359, %v478, %v477
        %v480 = vrot.slane %v283, 5
        %v481 = vsel %vm362, %v480, %v479
        %v482 = vrot.slane %v284, 4
        %v483 = vsel %vm365, %v482, %v481
        %v484 = vrot.slane %v285, 3
        %v485 = vsel %vm368, %v484, %v483
        %v486 = vrot.slane %v303, 2
        %v487 = vrot.slane %v304, 1
        %v488 = vsel %vm350, %v487, %v486
        %v489 = vsel %vm353, %v305, %v488
        %v490 = vrot.slane %v306, 7
        %v491 = vsel %vm356, %v490, %v489
        %v492 = vrot.slane %v324, 6
        %v493 = vsel %vm359, %v492, %v491
        %v494 = vrot.slane %v325, 5
        %v495 = vsel %vm362, %v494, %v493
        %v496 = vrot.slane %v326, 4
        %v497 = vsel %vm365, %v496, %v495
        %v498 = vrot.slane %v327, 3
        %v499 = vsel %vm368, %v498, %v497
        %v500 = vrot.slane %v345, 2
        %v501 = vrot.slane %v346, 1
        %v502 = vsel %vm350, %v501, %v500
        %v503 = vsel %vm353, %v347, %v502
        %v504 = vrot.slane %v348, 7
        %v505 = vsel %vm356, %v504, %v503
        %v509 = vrot.slane %v207, 3
        %v510 = vrot.slane %v209, 2
        %v511 = vsel %vm350, %v510, %v509
        %v512 = vrot.slane %v211, 1
        %v513 = vsel %vm353, %v512, %v511
        %v514 = vsel %vm356, %v213, %v513
        %v515 = vrot.slane %v240, 7
        %v516 = vsel %vm359, %v515, %v514
        %v517 = vrot.slane %v241, 6
        %v518 = vsel %vm362, %v517, %v516
        %v519 = vrot.slane %v242, 5
        %v520 = vsel %vm365, %v519, %v518
        %v521 = vrot.slane %v243, 4
        %v522 = vsel %vm368, %v521, %v520
        %v523 = vrot.slane %v261, 3
        %v524 = vrot.slane %v262, 2
        %v525 = vsel %vm350, %v524, %v523
        %v526 = vrot.slane %v263, 1
        %v527 = vsel %vm353, %v526, %v525
        %v528 = vsel %vm356, %v264, %v527
        %v529 = vrot.slane %v282, 7
        %v530 = vsel %vm359, %v529, %v528
        %v531 = vrot.slane %v283, 6
        %v532 = vsel %vm362, %v531, %v530
        %v533 = vrot.slane %v284, 5
        %v534 = vsel %vm365, %v533, %v532
        %v535 = vrot.slane %v285, 4
        %v536 = vsel %vm368, %v535, %v534
        %v537 = vrot.slane %v303, 3
        %v538 = vrot.slane %v304, 2
        %v539 = vsel %vm350, %v538, %v537
        %v540 = vrot.slane %v305, 1
        %v541 = vsel %vm353, %v540, %v539
        %v542 = vsel %vm356, %v306, %v541
        %v543 = vrot.slane %v324, 7
        %v544 = vsel %vm359, %v543, %v542
        %v545 = vrot.slane %v325, 6
        %v546 = vsel %vm362, %v545, %v544
        %v547 = vrot.slane %v326, 5
        %v548 = vsel %vm365, %v547, %v546
        %v549 = vrot.slane %v327, 4
        %v550 = vsel %vm368, %v549, %v548
        %v551 = vrot.slane %v345, 3
        %v552 = vrot.slane %v346, 2
        %v553 = vsel %vm350, %v552, %v551
        %v554 = vrot.slane %v347, 1
        %v555 = vsel %vm353, %v554, %v553
        %v556 = vsel %vm356, %v348, %v555
        %v560 = vrot.slane %v207, 4
        %v561 = vrot.slane %v209, 3
        %v562 = vsel %vm350, %v561, %v560
        %v563 = vrot.slane %v211, 2
        %v564 = vsel %vm353, %v563, %v562
        %v565 = vrot.slane %v213, 1
        %v566 = vsel %vm356, %v565, %v564
        %v567 = vsel %vm359, %v240, %v566
        %v568 = vrot.slane %v241, 7
        %v569 = vsel %vm362, %v568, %v567
        %v570 = vrot.slane %v242, 6
        %v571 = vsel %vm365, %v570, %v569
        %v572 = vrot.slane %v243, 5
        %v573 = vsel %vm368, %v572, %v571
        %v574 = vrot.slane %v261, 4
        %v575 = vrot.slane %v262, 3
        %v576 = vsel %vm350, %v575, %v574
        %v577 = vrot.slane %v263, 2
        %v578 = vsel %vm353, %v577, %v576
        %v579 = vrot.slane %v264, 1
        %v580 = vsel %vm356, %v579, %v578
        %v581 = vsel %vm359, %v282, %v580
        %v582 = vrot.slane %v283, 7
        %v583 = vsel %vm362, %v582, %v581
        %v584 = vrot.slane %v284, 6
        %v585 = vsel %vm365, %v584, %v583
        %v586 = vrot.slane %v285, 5
        %v587 = vsel %vm368, %v586, %v585
        %v588 = vrot.slane %v303, 4
        %v589 = vrot.slane %v304, 3
        %v590 = vsel %vm350, %v589, %v588
        %v591 = vrot.slane %v305, 2
        %v592 = vsel %vm353, %v591, %v590
        %v593 = vrot.slane %v306, 1
        %v594 = vsel %vm356, %v593, %v592
        %v595 = vsel %vm359, %v324, %v594
        %v596 = vrot.slane %v325, 7
        %v597 = vsel %vm362, %v596, %v595
        %v598 = vrot.slane %v326, 6
        %v599 = vsel %vm365, %v598, %v597
        %v600 = vrot.slane %v327, 5
        %v601 = vsel %vm368, %v600, %v599
        %v602 = vrot.slane %v345, 4
        %v603 = vrot.slane %v346, 3
        %v604 = vsel %vm350, %v603, %v602
        %v605 = vrot.slane %v347, 2
        %v606 = vsel %vm353, %v605, %v604
        %v607 = vrot.slane %v348, 1
        %v608 = vsel %vm356, %v607, %v606
        %v612 = vrot.slane %v207, 5
        %v613 = vrot.slane %v209, 4
        %v614 = vsel %vm350, %v613, %v612
        %v615 = vrot.slane %v211, 3
        %v616 = vsel %vm353, %v615, %v614
        %v617 = vrot.slane %v213, 2
        %v618 = vsel %vm356, %v617, %v616
        %v619 = vrot.slane %v240, 1
        %v620 = vsel %vm359, %v619, %v618
        %v621 = vsel %vm362, %v241, %v620
        %v622 = vrot.slane %v242, 7
        %v623 = vsel %vm365, %v622, %v621
        %v624 = vrot.slane %v243, 6
        %v625 = vsel %vm368, %v624, %v623
        %v626 = vrot.slane %v261, 5
        %v627 = vrot.slane %v262, 4
        %v628 = vsel %vm350, %v627, %v626
        %v629 = vrot.slane %v263, 3
        %v630 = vsel %vm353, %v629, %v628
        %v631 = vrot.slane %v264, 2
        %v632 = vsel %vm356, %v631, %v630
        %v633 = vrot.slane %v282, 1
        %v634 = vsel %vm359, %v633, %v632
        %v635 = vsel %vm362, %v283, %v634
        %v636 = vrot.slane %v284, 7
        %v637 = vsel %vm365, %v636, %v635
        %v638 = vrot.slane %v285, 6
        %v639 = vsel %vm368, %v638, %v637
        %v640 = vrot.slane %v303, 5
        %v641 = vrot.slane %v304, 4
        %v642 = vsel %vm350, %v641, %v640
        %v643 = vrot.slane %v305, 3
        %v644 = vsel %vm353, %v643, %v642
        %v645 = vrot.slane %v306, 2
        %v646 = vsel %vm356, %v645, %v644
        %v647 = vrot.slane %v324, 1
        %v648 = vsel %vm359, %v647, %v646
        %v649 = vsel %vm362, %v325, %v648
        %v650 = vrot.slane %v326, 7
        %v651 = vsel %vm365, %v650, %v649
        %v652 = vrot.slane %v327, 6
        %v653 = vsel %vm368, %v652, %v651
        %v654 = vrot.slane %v345, 5
        %v655 = vrot.slane %v346, 4
        %v656 = vsel %vm350, %v655, %v654
        %v657 = vrot.slane %v347, 3
        %v658 = vsel %vm353, %v657, %v656
        %v659 = vrot.slane %v348, 2
        %v660 = vsel %vm356, %v659, %v658
        %v664 = vrot.slane %v207, 6
        %v665 = vrot.slane %v209, 5
        %v666 = vsel %vm350, %v665, %v664
        %v667 = vrot.slane %v211, 4
        %v668 = vsel %vm353, %v667, %v666
        %v669 = vrot.slane %v213, 3
        %v670 = vsel %vm356, %v669, %v668
        %v671 = vrot.slane %v240, 2
        %v672 = vsel %vm359, %v671, %v670
        %v673 = vrot.slane %v241, 1
        %v674 = vsel %vm362, %v673, %v672
        %v675 = vsel %vm365, %v242, %v674
        %v676 = vrot.slane %v243, 7
        %v677 = vsel %vm368, %v676, %v675
        %v678 = vrot.slane %v261, 6
        %v679 = vrot.slane %v262, 5
        %v680 = vsel %vm350, %v679, %v678
        %v681 = vrot.slane %v263, 4
        %v682 = vsel %vm353, %v681, %v680
        %v683 = vrot.slane %v264, 3
        %v684 = vsel %vm356, %v683, %v682
        %v685 = vrot.slane %v282, 2
        %v686 = vsel %vm359, %v685, %v684
        %v687 = vrot.slane %v283, 1
        %v688 = vsel %vm362, %v687, %v686
        %v689 = vsel %vm365, %v284, %v688
        %v690 = vrot.slane %v285, 7
        %v691 = vsel %vm368, %v690, %v689
        %v692 = vrot.slane %v303, 6
        %v693 = vrot.slane %v304, 5
        %v694 = vsel %vm350, %v693, %v692
        %v695 = vrot.slane %v305, 4
        %v696 = vsel %vm353, %v695, %v694
        %v697 = vrot.slane %v306, 3
        %v698 = vsel %vm356, %v697, %v696
        %v699 = vrot.slane %v324, 2
        %v700 = vsel %vm359, %v699, %v698
        %v701 = vrot.slane %v325, 1
        %v702 = vsel %vm362, %v701, %v700
        %v703 = vsel %vm365, %v326, %v702
        %v704 = vrot.slane %v327, 7
        %v705 = vsel %vm368, %v704, %v703
        %v706 = vrot.slane %v345, 6
        %v707 = vrot.slane %v346, 5
        %v708 = vsel %vm350, %v707, %v706
        %v709 = vrot.slane %v347, 4
        %v710 = vsel %vm353, %v709, %v708
        %v711 = vrot.slane %v348, 3
        %v712 = vsel %vm356, %v711, %v710
        %v716 = vrot.slane %v207, 7
        %v717 = vrot.slane %v209, 6
        %v718 = vsel %vm350, %v717, %v716
        %v719 = vrot.slane %v211, 5
        %v720 = vsel %vm353, %v719, %v718
        %v721 = vrot.slane %v213, 4
        %v722 = vsel %vm356, %v721, %v720
        %v723 = vrot.slane %v240, 3
        %v724 = vsel %vm359, %v723, %v722
        %v725 = vrot.slane %v241, 2
        %v726 = vsel %vm362, %v725, %v724
        %v727 = vrot.slane %v242, 1
        %v728 = vsel %vm365, %v727, %v726
        %v729 = vsel %vm368, %v243, %v728
        %v730 = vrot.slane %v261, 7
        %v731 = vrot.slane %v262, 6
        %v732 = vsel %vm350, %v731, %v730
        %v733 = vrot.slane %v263, 5
        %v734 = vsel %vm353, %v733, %v732
        %v735 = vrot.slane %v264, 4
        %v736 = vsel %vm356, %v735, %v734
        %v737 = vrot.slane %v282, 3
        %v738 = vsel %vm359, %v737, %v736
        %v739 = vrot.slane %v283, 2
        %v740 = vsel %vm362, %v739, %v738
        %v741 = vrot.slane %v284, 1
        %v742 = vsel %vm365, %v741, %v740
        %v743 = vsel %vm368, %v285, %v742
        %v744 = vrot.slane %v303, 7
        %v745 = vrot.slane %v304, 6
        %v746 = vsel %vm350, %v745, %v744
        %v747 = vrot.slane %v305, 5
        %v748 = vsel %vm353, %v747, %v746
        %v749 = vrot.slane %v306, 4
        %v750 = vsel %vm356, %v749, %v748
        %v751 = vrot.slane %v324, 3
        %v752 = vsel %vm359, %v751, %v750
        %v753 = vrot.slane %v325, 2
        %v754 = vsel %vm362, %v753, %v752
        %v755 = vrot.slane %v326, 1
        %v756 = vsel %vm365, %v755, %v754
        %v757 = vsel %vm368, %v327, %v756
        %v758 = vrot.slane %v345, 7
        %v759 = vrot.slane %v346, 6
        %v760 = vsel %vm350, %v759, %v758
        %v761 = vrot.slane %v347, 5
        %v762 = vsel %vm353, %v761, %v760
        %v763 = vrot.slane %v348, 4
        %v764 = vsel %vm356, %v763, %v762
        %v768 = vld [vmem:[%s1] sm:$0xff]
        %v769 = vld [vmem:[%s2] sm:$0xff]
        %771 = vset.pattern.permute.xlu0 0
        %772 = vperm.xlu0 %771, %v769
        %v773 = vpop.permute.xlu0 %772
        %vm775 = vcmask 228352
        %v777 = vsel %vm775, %v768, 0
        %vm779 = vcmask 1043456
        %v780 = vsel %vm779, %v403, 0
        %v782 = vsel %vm779, %v454, 0
        %v784 = vsel %vm779, %v505, 0
        %v786 = vsel %vm779, %v556, 0
        %v788 = vsel %vm779, %v608, 0
        %v790 = vsel %vm779, %v660, 0
        %v792 = vsel %vm779, %v712, 0
        %v794 = vsel %vm779, %v764, 0
        %796 = vmatprep.subr.mxu0 %v420
        %797 = vmatpush1.msra.mxu0 %v369
        %798 = vmatprep.subr.mxu0 %v434
        %799 = vmatpush1.msra.mxu0 %v383
        %800 = vmatprep.subr.mxu0 %v448
        %801 = vmatpush1.msra.mxu0 %v397
        %802 = vmatprep.subr.mxu0 %v782
        %803 = vmatpush1.msra.mxu0 %v780
        %804 = vmatprep.subr.mxu0 0.0
        %805 = vmatpush1.msra.mxu0 0.0
        %806 = vmatprep.subr.mxu0 0.0
        %807 = vmatpush1.msra.mxu0 0.0
        %808 = vmatprep.subr.mxu0 0.0
        %809 = vmatpush1.msra.mxu0 0.0
        %810 = vmatprep.subr.mxu0 0.0
        %811 = vmatpush1.msra.mxu0 0.0
        %812 = vmatprep.subr.mxu0 0.0
        %813 = vmatpush1.msra.mxu0 0.0
        %814 = vmatprep.subr.mxu0 0.0
        %815 = vmatpush1.msra.mxu0 0.0
        %816 = vmatprep.subr.mxu0 0.0
        %817 = vmatpush1.msra.mxu0 0.0
        %818 = vmatprep.subr.mxu0 0.0
        %819 = vmatpush1.msra.mxu0 0.0
        %820 = vmatprep.subr.mxu0 0.0
        %821 = vmatpush1.msra.mxu0 0.0
        %822 = vmatprep.subr.mxu0 0.0
        %823 = vmatpush1.msra.mxu0 0.0
        %824 = vmatprep.subr.mxu0 0.0
        %825 = vmatpush1.msra.mxu0 0.0
        %826 = vmatprep.subr.mxu0 0.0
        %827 = vmatpush1.msra.mxu0 0.0
        %828 = vmatprep.subr.mxu0 0.0
        %829 = vmatpush1.msra.mxu0 0.0
        %830 = vmatprep.subr.mxu0 0.0
        %831 = vmatpush1.msra.mxu0 0.0
        %832 = vmatprep.subr.mxu0 0.0
        %833 = vmatpush1.msra.mxu0 0.0
        %834 = vmatprep.subr.mxu0 0.0
        %835 = vmatpush1.msra.mxu0 0.0
        %836 = vmatprep.subr.mxu0 0.0
        %837 = vmatpush1.msra.mxu0 0.0
        %838 = vmatprep.subr.mxu0 0.0
        %839 = vmatpush1.msra.mxu0 0.0
        %840 = vmatprep.subr.mxu0 0.0
        %841 = vmatpush1.msra.mxu0 0.0
        %842 = vmatprep.subr.mxu0 0.0
        %843 = vmatpush1.msra.mxu0 0.0
        %844 = vmatprep.subr.mxu0 0.0
        %845 = vmatpush1.msra.mxu0 0.0
        %846 = vmatprep.subr.mxu0 0.0
        %847 = vmatpush1.msra.mxu0 0.0
        %848 = vmatprep.subr.mxu0 0.0
        %849 = vmatpush1.msra.mxu0 0.0
        %850 = vmatprep.subr.mxu0 0.0
        %851 = vmatpush1.msra.mxu0 0.0
        %852 = vmatprep.subr.mxu0 0.0
        %853 = vmatpush1.msra.mxu0 0.0
        %854 = vmatprep.subr.mxu0 0.0
        %855 = vmatpush1.msra.mxu0 0.0
        %856 = vmatprep.subr.mxu0 0.0
        %857 = vmatpush1.msra.mxu0 0.0
        %858 = vmatprep.subr.mxu0 0.0
        %859 = vmatpush1.msra.mxu0 0.0
        %860 = vmatprep.mubr.f32.mxu0 0.0
        %861 = vmatmul.mubr.f32.gmra.mrb[0].mxu0 %v777
        %v862 = vpop.f32.mrb[0].mxu0
        %v863 = vadd.f32 %v773, %v862
        %v864 = vpop.f32.mrb[0].mxu0
        %v865 = vadd.f32 %v773, %v864
        %866 = vdwg.mxu0
        %867 = vmatprep.subr.mxu0 %v522
        %868 = vmatpush1.msra.mxu0 %v471
        %869 = vmatprep.subr.mxu0 %v536
        %870 = vmatpush1.msra.mxu0 %v485
        %871 = vmatprep.subr.mxu0 %v550
        %872 = vmatpush1.msra.mxu0 %v499
        %873 = vmatprep.subr.mxu0 %v786
        %874 = vmatpush1.msra.mxu0 %v784
        %875 = vmatprep.subr.mxu0 0.0
        %876 = vmatpush1.msra.mxu0 0.0
        %877 = vmatprep.subr.mxu0 0.0
        %878 = vmatpush1.msra.mxu0 0.0
        %879 = vmatprep.subr.mxu0 0.0
        %880 = vmatpush1.msra.mxu0 0.0
        %881 = vmatprep.subr.mxu0 0.0
        %882 = vmatpush1.msra.mxu0 0.0
        %883 = vmatprep.subr.mxu0 0.0
        %884 = vmatpush1.msra.mxu0 0.0
        %885 = vmatprep.subr.mxu0 0.0
        %886 = vmatpush1.msra.mxu0 0.0
        %887 = vmatprep.subr.mxu0 0.0
        %888 = vmatpush1.msra.mxu0 0.0
        %889 = vmatprep.subr.mxu0 0.0
        %890 = vmatpush1.msra.mxu0 0.0
        %891 = vmatprep.subr.mxu0 0.0
        %892 = vmatpush1.msra.mxu0 0.0
        %893 = vmatprep.subr.mxu0 0.0
        %894 = vmatpush1.msra.mxu0 0.0
        %895 = vmatprep.subr.mxu0 0.0
        %896 = vmatpush1.msra.mxu0 0.0
        %897 = vmatprep.subr.mxu0 0.0
        %898 = vmatpush1.msra.mxu0 0.0
        %899 = vmatprep.subr.mxu0 0.0
        %900 = vmatpush1.msra.mxu0 0.0
        %901 = vmatprep.subr.mxu0 0.0
        %902 = vmatpush1.msra.mxu0 0.0
        %903 = vmatprep.subr.mxu0 0.0
        %904 = vmatpush1.msra.mxu0 0.0
        %905 = vmatprep.subr.mxu0 0.0
        %906 = vmatpush1.msra.mxu0 0.0
        %907 = vmatprep.subr.mxu0 0.0
        %908 = vmatpush1.msra.mxu0 0.0
        %909 = vmatprep.subr.mxu0 0.0
        %910 = vmatpush1.msra.mxu0 0.0
        %911 = vmatprep.subr.mxu0 0.0
        %912 = vmatpush1.msra.mxu0 0.0
        %913 = vmatprep.subr.mxu0 0.0
        %914 = vmatpush1.msra.mxu0 0.0
        %915 = vmatprep.subr.mxu0 0.0
        %916 = vmatpush1.msra.mxu0 0.0
        %917 = vmatprep.subr.mxu0 0.0
        %918 = vmatpush1.msra.mxu0 0.0
        %919 = vmatprep.subr.mxu0 0.0
        %920 = vmatpush1.msra.mxu0 0.0
        %921 = vmatprep.subr.mxu0 0.0
        %922 = vmatpush1.msra.mxu0 0.0
        %923 = vmatprep.subr.mxu0 0.0
        %924 = vmatpush1.msra.mxu0 0.0
        %925 = vmatprep.subr.mxu0 0.0
        %926 = vmatpush1.msra.mxu0 0.0
        %927 = vmatprep.subr.mxu0 0.0
        %928 = vmatpush1.msra.mxu0 0.0
        %929 = vmatprep.subr.mxu0 0.0
        %930 = vmatpush1.msra.mxu0 0.0
        %931 = vmatprep.mubr.f32.mxu0 0.0
        %932 = vmatmul.mubr.f32.gmra.mrb[0].mxu0 %v777
        %v933 = vpop.f32.mrb[0].mxu0
        %v934 = vadd.f32 %v773, %v933
        %v935 = vpop.f32.mrb[0].mxu0
        %v936 = vadd.f32 %v773, %v935
        %937 = vdwg.mxu0
        %938 = vmatprep.subr.mxu0 %v625
        %939 = vmatpush1.msra.mxu0 %v573
        %940 = vmatprep.subr.mxu0 %v639
        %941 = vmatpush1.msra.mxu0 %v587
        %942 = vmatprep.subr.mxu0 %v653
        %943 = vmatpush1.msra.mxu0 %v601
        %944 = vmatprep.subr.mxu0 %v790
        %945 = vmatpush1.msra.mxu0 %v788
        %946 = vmatprep.subr.mxu0 0.0
        %947 = vmatpush1.msra.mxu0 0.0
        %948 = vmatprep.subr.mxu0 0.0
        %949 = vmatpush1.msra.mxu0 0.0
        %950 = vmatprep.subr.mxu0 0.0
        %951 = vmatpush1.msra.mxu0 0.0
        %952 = vmatprep.subr.mxu0 0.0
        %953 = vmatpush1.msra.mxu0 0.0
        %954 = vmatprep.subr.mxu0 0.0
        %955 = vmatpush1.msra.mxu0 0.0
        %956 = vmatprep.subr.mxu0 0.0
        %957 = vmatpush1.msra.mxu0 0.0
        %958 = vmatprep.subr.mxu0 0.0
        %959 = vmatpush1.msra.mxu0 0.0
        %960 = vmatprep.subr.mxu0 0.0
        %961 = vmatpush1.msra.mxu0 0.0
        %962 = vmatprep.subr.mxu0 0.0
        %963 = vmatpush1.msra.mxu0 0.0
        %964 = vmatprep.subr.mxu0 0.0
        %965 = vmatpush1.msra.mxu0 0.0
        %966 = vmatprep.subr.mxu0 0.0
        %967 = vmatpush1.msra.mxu0 0.0
        %968 = vmatprep.subr.mxu0 0.0
        %969 = vmatpush1.msra.mxu0 0.0
        %970 = vmatprep.subr.mxu0 0.0
        %971 = vmatpush1.msra.mxu0 0.0
        %972 = vmatprep.subr.mxu0 0.0
        %973 = vmatpush1.msra.mxu0 0.0
        %974 = vmatprep.subr.mxu0 0.0
        %975 = vmatpush1.msra.mxu0 0.0
        %976 = vmatprep.subr.mxu0 0.0
        %977 = vmatpush1.msra.mxu0 0.0
        %978 = vmatprep.subr.mxu0 0.0
        %979 = vmatpush1.msra.mxu0 0.0
        %980 = vmatprep.subr.mxu0 0.0
        %981 = vmatpush1.msra.mxu0 0.0
        %982 = vmatprep.subr.mxu0 0.0
        %983 = vmatpush1.msra.mxu0 0.0
        %984 = vmatprep.subr.mxu0 0.0
        %985 = vmatpush1.msra.mxu0 0.0
        %986 = vmatprep.subr.mxu0 0.0
        %987 = vmatpush1.msra.mxu0 0.0
        %988 = vmatprep.subr.mxu0 0.0
        %989 = vmatpush1.msra.mxu0 0.0
        %990 = vmatprep.subr.mxu0 0.0
        %991 = vmatpush1.msra.mxu0 0.0
        %992 = vmatprep.subr.mxu0 0.0
        %993 = vmatpush1.msra.mxu0 0.0
        %994 = vmatprep.subr.mxu0 0.0
        %995 = vmatpush1.msra.mxu0 0.0
        %996 = vmatprep.subr.mxu0 0.0
        %997 = vmatpush1.msra.mxu0 0.0
        %998 = vmatprep.subr.mxu0 0.0
        %999 = vmatpush1.msra.mxu0 0.0
        %1000 = vmatprep.subr.mxu0 0.0
        %1001 = vmatpush1.msra.mxu0 0.0
        %1002 = vmatprep.mubr.f32.mxu0 0.0
        %1003 = vmatmul.mubr.f32.gmra.mrb[0].mxu0 %v777
        %v1004 = vpop.f32.mrb[0].mxu0
        %v1005 = vadd.f32 %v773, %v1004
        %v1006 = vpop.f32.mrb[0].mxu0
        %v1007 = vadd.f32 %v773, %v1006
        %1008 = vdwg.mxu0
        %1009 = vmatprep.subr.mxu0 %v729
        %1010 = vmatpush1.msra.mxu0 %v677
        %1011 = vmatprep.subr.mxu0 %v743
        %1012 = vmatpush1.msra.mxu0 %v691
        %1013 = vmatprep.subr.mxu0 %v757
        %1014 = vmatpush1.msra.mxu0 %v705
        %1015 = vmatprep.subr.mxu0 %v794
        %1016 = vmatpush1.msra.mxu0 %v792
        %1017 = vmatprep.subr.mxu0 0.0
        %1018 = vmatpush1.msra.mxu0 0.0
        %1019 = vmatprep.subr.mxu0 0.0
        %1020 = vmatpush1.msra.mxu0 0.0
        %1021 = vmatprep.subr.mxu0 0.0
        %1022 = vmatpush1.msra.mxu0 0.0
        %1023 = vmatprep.subr.mxu0 0.0
        %1024 = vmatpush1.msra.mxu0 0.0
        %1025 = vmatprep.subr.mxu0 0.0
        %1026 = vmatpush1.msra.mxu0 0.0
        %1027 = vmatprep.subr.mxu0 0.0
        %1028 = vmatpush1.msra.mxu0 0.0
        %1029 = vmatprep.subr.mxu0 0.0
        %1030 = vmatpush1.msra.mxu0 0.0
        %1031 = vmatprep.subr.mxu0 0.0
        %1032 = vmatpush1.msra.mxu0 0.0
        %1033 = vmatprep.subr.mxu0 0.0
        %1034 = vmatpush1.msra.mxu0 0.0
        %1035 = vmatprep.subr.mxu0 0.0
        %1036 = vmatpush1.msra.mxu0 0.0
        %1037 = vmatprep.subr.mxu0 0.0
        %1038 = vmatpush1.msra.mxu0 0.0
        %1039 = vmatprep.subr.mxu0 0.0
        %1040 = vmatpush1.msra.mxu0 0.0
        %1041 = vmatprep.subr.mxu0 0.0
        %1042 = vmatpush1.msra.mxu0 0.0
        %1043 = vmatprep.subr.mxu0 0.0
        %1044 = vmatpush1.msra.mxu0 0.0
        %1045 = vmatprep.subr.mxu0 0.0
        %1046 = vmatpush1.msra.mxu0 0.0
        %1047 = vmatprep.subr.mxu0 0.0
        %1048 = vmatpush1.msra.mxu0 0.0
        %1049 = vmatprep.subr.mxu0 0.0
        %1050 = vmatpush1.msra.mxu0 0.0
        %1051 = vmatprep.subr.mxu0 0.0
        %1052 = vmatpush1.msra.mxu0 0.0
        %1053 = vmatprep.subr.mxu0 0.0
        %1054 = vmatpush1.msra.mxu0 0.0
        %1055 = vmatprep.subr.mxu0 0.0
        %1056 = vmatpush1.msra.mxu0 0.0
        %1057 = vmatprep.subr.mxu0 0.0
        %1058 = vmatpush1.msra.mxu0 0.0
        %1059 = vmatprep.subr.mxu0 0.0
        %1060 = vmatpush1.msra.mxu0 0.0
        %1061 = vmatprep.subr.mxu0 0.0
        %1062 = vmatpush1.msra.mxu0 0.0
        %1063 = vmatprep.subr.mxu0 0.0
        %1064 = vmatpush1.msra.mxu0 0.0
        %1065 = vmatprep.subr.mxu0 0.0
        %1066 = vmatpush1.msra.mxu0 0.0
        %1067 = vmatprep.subr.mxu0 0.0
        %1068 = vmatpush1.msra.mxu0 0.0
        %1069 = vmatprep.subr.mxu0 0.0
        %1070 = vmatpush1.msra.mxu0 0.0
        %1071 = vmatprep.subr.mxu0 0.0
        %1072 = vmatpush1.msra.mxu0 0.0
        %1073 = vmatprep.mubr.f32.mxu0 0.0
        %1074 = vmatmul.mubr.f32.gmra.mrb[0].mxu0 %v777
        %v1075 = vpop.f32.mrb[0].mxu0
        %v1076 = vadd.f32 %v773, %v1075
        %v1077 = vpop.f32.mrb[0].mxu0
        %v1078 = vadd.f32 %v773, %v1077
        %1079 = vdwg.mxu0
        %v1081 = vcombine.high %v863, %v863
        %v1083 = vunpack.c.l.s4 1966171168
        %v1084 = vunpack.c.0.s8 %v1083
        %v1085 = vlaneseq
        %v1086 = vshrl.u32 %v1085, 7
        %v1087 = vsub.s32 %v1084, %v1086
        %v1088 = vrot.slane %v863, %v1087
        %v1090 = vunpack.c.l.s4 1966171168
        %v1091 = vunpack.c.0.s8 %v1090
        %v1092 = vlaneseq
        %v1093 = vshrl.u32 %v1092, 7
        %v1094 = vsub.s32 %v1091, %v1093
        %v1095 = vrot.slane %v1081, %v1094
        %v1096 = vcombine.high %v1088, %v1088
        %v1097 = vcombine.high %v1095, %v1095
        %v1099 = vunpack.c.l.s4 1966171168
        %v1100 = vunpack.c.0.s8 %v1099
        %v1101 = vlaneseq
        %v1102 = vshrl.u32 %v1101, 7
        %v1103 = vsub.s32 %v1100, %v1102
        %v1104 = vrot.slane %v1088, %v1103
        %v1106 = vunpack.c.l.s4 1966171168
        %v1107 = vunpack.c.0.s8 %v1106
        %v1108 = vlaneseq
        %v1109 = vshrl.u32 %v1108, 7
        %v1110 = vsub.s32 %v1107, %v1109
        %v1111 = vrot.slane %v1095, %v1110
        %v1113 = vunpack.c.l.s4 1966171168
        %v1114 = vunpack.c.0.s8 %v1113
        %v1115 = vlaneseq
        %v1116 = vshrl.u32 %v1115, 7
        %v1117 = vsub.s32 %v1114, %v1116
        %v1118 = vrot.slane %v1096, %v1117
        %v1120 = vunpack.c.l.s4 1966171168
        %v1121 = vunpack.c.0.s8 %v1120
        %v1122 = vlaneseq
        %v1123 = vshrl.u32 %v1122, 7
        %v1124 = vsub.s32 %v1121, %v1123
        %v1125 = vrot.slane %v1097, %v1124
        %v1126 = vcombine.high %v1104, %v1104
        %v1127 = vcombine.high %v1111, %v1111
        %v1128 = vcombine.high %v1118, %v1118
        %v1129 = vcombine.high %v1125, %v1125
        %1138 = vst [vmem:[%s206] sm:$0x1] %v1104
        %1139 = vst [vmem:[%s206 + $0x8] sm:$0x1] %v1118
        %1140 = vst [vmem:[%s206 + $0x10] sm:$0x1] %v1126
        %1141 = vst [vmem:[%s206 + $0x18] sm:$0x1] %v1128
        %1142 = vst [vmem:[%s206 + $0x20] sm:$0x1] %v1111
        %1143 = vst [vmem:[%s206 + $0x28] sm:$0x1] %v1125
        %1144 = vst [vmem:[%s206 + $0x30] sm:$0x1] %v1127
        %1145 = vst [vmem:[%s206 + $0x38] sm:$0x1] %v1129
        %v1147 = vcombine.high %v865, %v865
        %v1149 = vunpack.c.l.s4 1966171168
        %v1150 = vunpack.c.0.s8 %v1149
        %v1151 = vlaneseq
        %v1152 = vshrl.u32 %v1151, 7
        %v1153 = vsub.s32 %v1150, %v1152
        %v1154 = vrot.slane %v865, %v1153
        %v1156 = vunpack.c.l.s4 1966171168
        %v1157 = vunpack.c.0.s8 %v1156
        %v1158 = vlaneseq
        %v1159 = vshrl.u32 %v1158, 7
        %v1160 = vsub.s32 %v1157, %v1159
        %v1161 = vrot.slane %v1147, %v1160
        %v1162 = vcombine.high %v1154, %v1154
        %v1163 = vcombine.high %v1161, %v1161
        %v1165 = vunpack.c.l.s4 1966171168
        %v1166 = vunpack.c.0.s8 %v1165
        %v1167 = vlaneseq
        %v1168 = vshrl.u32 %v1167, 7
        %v1169 = vsub.s32 %v1166, %v1168
        %v1170 = vrot.slane %v1154, %v1169
        %v1172 = vunpack.c.l.s4 1966171168
        %v1173 = vunpack.c.0.s8 %v1172
        %v1174 = vlaneseq
        %v1175 = vshrl.u32 %v1174, 7
        %v1176 = vsub.s32 %v1173, %v1175
        %v1177 = vrot.slane %v1161, %v1176
        %v1179 = vunpack.c.l.s4 1966171168
        %v1180 = vunpack.c.0.s8 %v1179
        %v1181 = vlaneseq
        %v1182 = vshrl.u32 %v1181, 7
        %v1183 = vsub.s32 %v1180, %v1182
        %v1184 = vrot.slane %v1162, %v1183
        %v1186 = vunpack.c.l.s4 1966171168
        %v1187 = vunpack.c.0.s8 %v1186
        %v1188 = vlaneseq
        %v1189 = vshrl.u32 %v1188, 7
        %v1190 = vsub.s32 %v1187, %v1189
        %v1191 = vrot.slane %v1163, %v1190
        %v1192 = vcombine.high %v1170, %v1170
        %v1193 = vcombine.high %v1177, %v1177
        %v1194 = vcombine.high %v1184, %v1184
        %v1195 = vcombine.high %v1191, %v1191
        %1204 = vst [vmem:[%s206 + $0x1] sm:$0x1] %v1170
        %1205 = vst [vmem:[%s206 + $0x9] sm:$0x1] %v1184
        %1206 = vst [vmem:[%s206 + $0x11] sm:$0x1] %v1192
        %1207 = vst [vmem:[%s206 + $0x19] sm:$0x1] %v1194
        %1208 = vst [vmem:[%s206 + $0x21] sm:$0x1] %v1177
        %1209 = vst [vmem:[%s206 + $0x29] sm:$0x1] %v1191
        %1210 = vst [vmem:[%s206 + $0x31] sm:$0x1] %v1193
        %1211 = vst [vmem:[%s206 + $0x39] sm:$0x1] %v1195
        %v1213 = vcombine.high %v934, %v934
        %v1215 = vunpack.c.l.s4 1966171168
        %v1216 = vunpack.c.0.s8 %v1215
        %v1217 = vlaneseq
        %v1218 = vshrl.u32 %v1217, 7
        %v1219 = vsub.s32 %v1216, %v1218
        %v1220 = vrot.slane %v934, %v1219
        %v1222 = vunpack.c.l.s4 1966171168
        %v1223 = vunpack.c.0.s8 %v1222
        %v1224 = vlaneseq
        %v1225 = vshrl.u32 %v1224, 7
        %v1226 = vsub.s32 %v1223, %v1225
        %v1227 = vrot.slane %v1213, %v1226
        %v1228 = vcombine.high %v1220, %v1220
        %v1229 = vcombine.high %v1227, %v1227
        %v1231 = vunpack.c.l.s4 1966171168
        %v1232 = vunpack.c.0.s8 %v1231
        %v1233 = vlaneseq
        %v1234 = vshrl.u32 %v1233, 7
        %v1235 = vsub.s32 %v1232, %v1234
        %v1236 = vrot.slane %v1220, %v1235
        %v1238 = vunpack.c.l.s4 1966171168
        %v1239 = vunpack.c.0.s8 %v1238
        %v1240 = vlaneseq
        %v1241 = vshrl.u32 %v1240, 7
        %v1242 = vsub.s32 %v1239, %v1241
        %v1243 = vrot.slane %v1227, %v1242
        %v1245 = vunpack.c.l.s4 1966171168
        %v1246 = vunpack.c.0.s8 %v1245
        %v1247 = vlaneseq
        %v1248 = vshrl.u32 %v1247, 7
        %v1249 = vsub.s32 %v1246, %v1248
        %v1250 = vrot.slane %v1228, %v1249
        %v1252 = vunpack.c.l.s4 1966171168
        %v1253 = vunpack.c.0.s8 %v1252
        %v1254 = vlaneseq
        %v1255 = vshrl.u32 %v1254, 7
        %v1256 = vsub.s32 %v1253, %v1255
        %v1257 = vrot.slane %v1229, %v1256
        %v1258 = vcombine.high %v1236, %v1236
        %v1259 = vcombine.high %v1243, %v1243
        %v1260 = vcombine.high %v1250, %v1250
        %v1261 = vcombine.high %v1257, %v1257
        %1270 = vst [vmem:[%s206 + $0x2] sm:$0x1] %v1236
        %1271 = vst [vmem:[%s206 + $0xa] sm:$0x1] %v1250
        %1272 = vst [vmem:[%s206 + $0x12] sm:$0x1] %v1258
        %1273 = vst [vmem:[%s206 + $0x1a] sm:$0x1] %v1260
        %1274 = vst [vmem:[%s206 + $0x22] sm:$0x1] %v1243
        %1275 = vst [vmem:[%s206 + $0x2a] sm:$0x1] %v1257
        %1276 = vst [vmem:[%s206 + $0x32] sm:$0x1] %v1259
        %1277 = vst [vmem:[%s206 + $0x3a] sm:$0x1] %v1261
        %v1279 = vcombine.high %v936, %v936
        %v1281 = vunpack.c.l.s4 1966171168
        %v1282 = vunpack.c.0.s8 %v1281
        %v1283 = vlaneseq
        %v1284 = vshrl.u32 %v1283, 7
        %v1285 = vsub.s32 %v1282, %v1284
        %v1286 = vrot.slane %v936, %v1285
        %v1288 = vunpack.c.l.s4 1966171168
        %v1289 = vunpack.c.0.s8 %v1288
        %v1290 = vlaneseq
        %v1291 = vshrl.u32 %v1290, 7
        %v1292 = vsub.s32 %v1289, %v1291
        %v1293 = vrot.slane %v1279, %v1292
        %v1294 = vcombine.high %v1286, %v1286
        %v1295 = vcombine.high %v1293, %v1293
        %v1297 = vunpack.c.l.s4 1966171168
        %v1298 = vunpack.c.0.s8 %v1297
        %v1299 = vlaneseq
        %v1300 = vshrl.u32 %v1299, 7
        %v1301 = vsub.s32 %v1298, %v1300
        %v1302 = vrot.slane %v1286, %v1301
        %v1304 = vunpack.c.l.s4 1966171168
        %v1305 = vunpack.c.0.s8 %v1304
        %v1306 = vlaneseq
        %v1307 = vshrl.u32 %v1306, 7
        %v1308 = vsub.s32 %v1305, %v1307
        %v1309 = vrot.slane %v1293, %v1308
        %v1311 = vunpack.c.l.s4 1966171168
        %v1312 = vunpack.c.0.s8 %v1311
        %v1313 = vlaneseq
        %v1314 = vshrl.u32 %v1313, 7
        %v1315 = vsub.s32 %v1312, %v1314
        %v1316 = vrot.slane %v1294, %v1315
        %v1318 = vunpack.c.l.s4 1966171168
        %v1319 = vunpack.c.0.s8 %v1318
        %v1320 = vlaneseq
        %v1321 = vshrl.u32 %v1320, 7
        %v1322 = vsub.s32 %v1319, %v1321
        %v1323 = vrot.slane %v1295, %v1322
        %v1324 = vcombine.high %v1302, %v1302
        %v1325 = vcombine.high %v1309, %v1309
        %v1326 = vcombine.high %v1316, %v1316
        %v1327 = vcombine.high %v1323, %v1323
        %1336 = vst [vmem:[%s206 + $0x3] sm:$0x1] %v1302
        %1337 = vst [vmem:[%s206 + $0xb] sm:$0x1] %v1316
        %1338 = vst [vmem:[%s206 + $0x13] sm:$0x1] %v1324
        %1339 = vst [vmem:[%s206 + $0x1b] sm:$0x1] %v1326
        %1340 = vst [vmem:[%s206 + $0x23] sm:$0x1] %v1309
        %1341 = vst [vmem:[%s206 + $0x2b] sm:$0x1] %v1323
        %1342 = vst [vmem:[%s206 + $0x33] sm:$0x1] %v1325
        %1343 = vst [vmem:[%s206 + $0x3b] sm:$0x1] %v1327
        %v1345 = vcombine.high %v1005, %v1005
        %v1347 = vunpack.c.l.s4 1966171168
        %v1348 = vunpack.c.0.s8 %v1347
        %v1349 = vlaneseq
        %v1350 = vshrl.u32 %v1349, 7
        %v1351 = vsub.s32 %v1348, %v1350
        %v1352 = vrot.slane %v1005, %v1351
        %v1354 = vunpack.c.l.s4 1966171168
        %v1355 = vunpack.c.0.s8 %v1354
        %v1356 = vlaneseq
        %v1357 = vshrl.u32 %v1356, 7
        %v1358 = vsub.s32 %v1355, %v1357
        %v1359 = vrot.slane %v1345, %v1358
        %v1360 = vcombine.high %v1352, %v1352
        %v1361 = vcombine.high %v1359, %v1359
        %v1363 = vunpack.c.l.s4 1966171168
        %v1364 = vunpack.c.0.s8 %v1363
        %v1365 = vlaneseq
        %v1366 = vshrl.u32 %v1365, 7
        %v1367 = vsub.s32 %v1364, %v1366
        %v1368 = vrot.slane %v1352, %v1367
        %v1370 = vunpack.c.l.s4 1966171168
        %v1371 = vunpack.c.0.s8 %v1370
        %v1372 = vlaneseq
        %v1373 = vshrl.u32 %v1372, 7
        %v1374 = vsub.s32 %v1371, %v1373
        %v1375 = vrot.slane %v1359, %v1374
        %v1377 = vunpack.c.l.s4 1966171168
        %v1378 = vunpack.c.0.s8 %v1377
        %v1379 = vlaneseq
        %v1380 = vshrl.u32 %v1379, 7
        %v1381 = vsub.s32 %v1378, %v1380
        %v1382 = vrot.slane %v1360, %v1381
        %v1384 = vunpack.c.l.s4 1966171168
        %v1385 = vunpack.c.0.s8 %v1384
        %v1386 = vlaneseq
        %v1387 = vshrl.u32 %v1386, 7
        %v1388 = vsub.s32 %v1385, %v1387
        %v1389 = vrot.slane %v1361, %v1388
        %v1390 = vcombine.high %v1368, %v1368
        %v1391 = vcombine.high %v1375, %v1375
        %v1392 = vcombine.high %v1382, %v1382
        %v1393 = vcombine.high %v1389, %v1389
        %1402 = vst [vmem:[%s206 + $0x4] sm:$0x1] %v1368
        %1403 = vst [vmem:[%s206 + $0xc] sm:$0x1] %v1382
        %1404 = vst [vmem:[%s206 + $0x14] sm:$0x1] %v1390
        %1405 = vst [vmem:[%s206 + $0x1c] sm:$0x1] %v1392
        %1406 = vst [vmem:[%s206 + $0x24] sm:$0x1] %v1375
        %1407 = vst [vmem:[%s206 + $0x2c] sm:$0x1] %v1389
        %1408 = vst [vmem:[%s206 + $0x34] sm:$0x1] %v1391
        %1409 = vst [vmem:[%s206 + $0x3c] sm:$0x1] %v1393
        %v1411 = vcombine.high %v1007, %v1007
        %v1413 = vunpack.c.l.s4 1966171168
        %v1414 = vunpack.c.0.s8 %v1413
        %v1415 = vlaneseq
        %v1416 = vshrl.u32 %v1415, 7
        %v1417 = vsub.s32 %v1414, %v1416
        %v1418 = vrot.slane %v1007, %v1417
        %v1420 = vunpack.c.l.s4 1966171168
        %v1421 = vunpack.c.0.s8 %v1420
        %v1422 = vlaneseq
        %v1423 = vshrl.u32 %v1422, 7
        %v1424 = vsub.s32 %v1421, %v1423
        %v1425 = vrot.slane %v1411, %v1424
        %v1426 = vcombine.high %v1418, %v1418
        %v1427 = vcombine.high %v1425, %v1425
        %v1429 = vunpack.c.l.s4 1966171168
        %v1430 = vunpack.c.0.s8 %v1429
        %v1431 = vlaneseq
        %v1432 = vshrl.u32 %v1431, 7
        %v1433 = vsub.s32 %v1430, %v1432
        %v1434 = vrot.slane %v1418, %v1433
        %v1436 = vunpack.c.l.s4 1966171168
        %v1437 = vunpack.c.0.s8 %v1436
        %v1438 = vlaneseq
        %v1439 = vshrl.u32 %v1438, 7
        %v1440 = vsub.s32 %v1437, %v1439
        %v1441 = vrot.slane %v1425, %v1440
        %v1443 = vunpack.c.l.s4 1966171168
        %v1444 = vunpack.c.0.s8 %v1443
        %v1445 = vlaneseq
        %v1446 = vshrl.u32 %v1445, 7
        %v1447 = vsub.s32 %v1444, %v1446
        %v1448 = vrot.slane %v1426, %v1447
        %v1450 = vunpack.c.l.s4 1966171168
        %v1451 = vunpack.c.0.s8 %v1450
        %v1452 = vlaneseq
        %v1453 = vshrl.u32 %v1452, 7
        %v1454 = vsub.s32 %v1451, %v1453
        %v1455 = vrot.slane %v1427, %v1454
        %v1456 = vcombine.high %v1434, %v1434
        %v1457 = vcombine.high %v1441, %v1441
        %v1458 = vcombine.high %v1448, %v1448
        %v1459 = vcombine.high %v1455, %v1455
        %1468 = vst [vmem:[%s206 + $0x5] sm:$0x1] %v1434
        %1469 = vst [vmem:[%s206 + $0xd] sm:$0x1] %v1448
        %1470 = vst [vmem:[%s206 + $0x15] sm:$0x1] %v1456
        %1471 = vst [vmem:[%s206 + $0x1d] sm:$0x1] %v1458
        %1472 = vst [vmem:[%s206 + $0x25] sm:$0x1] %v1441
        %1473 = vst [vmem:[%s206 + $0x2d] sm:$0x1] %v1455
        %1474 = vst [vmem:[%s206 + $0x35] sm:$0x1] %v1457
        %1475 = vst [vmem:[%s206 + $0x3d] sm:$0x1] %v1459
        %v1477 = vcombine.high %v1076, %v1076
        %v1479 = vunpack.c.l.s4 1966171168
        %v1480 = vunpack.c.0.s8 %v1479
        %v1481 = vlaneseq
        %v1482 = vshrl.u32 %v1481, 7
        %v1483 = vsub.s32 %v1480, %v1482
        %v1484 = vrot.slane %v1076, %v1483
        %v1486 = vunpack.c.l.s4 1966171168
        %v1487 = vunpack.c.0.s8 %v1486
        %v1488 = vlaneseq
        %v1489 = vshrl.u32 %v1488, 7
        %v1490 = vsub.s32 %v1487, %v1489
        %v1491 = vrot.slane %v1477, %v1490
        %v1492 = vcombine.high %v1484, %v1484
        %v1493 = vcombine.high %v1491, %v1491
        %v1495 = vunpack.c.l.s4 1966171168
        %v1496 = vunpack.c.0.s8 %v1495
        %v1497 = vlaneseq
        %v1498 = vshrl.u32 %v1497, 7
        %v1499 = vsub.s32 %v1496, %v1498
        %v1500 = vrot.slane %v1484, %v1499
        %v1502 = vunpack.c.l.s4 1966171168
        %v1503 = vunpack.c.0.s8 %v1502
        %v1504 = vlaneseq
        %v1505 = vshrl.u32 %v1504, 7
        %v1506 = vsub.s32 %v1503, %v1505
        %v1507 = vrot.slane %v1491, %v1506
        %v1509 = vunpack.c.l.s4 1966171168
        %v1510 = vunpack.c.0.s8 %v1509
        %v1511 = vlaneseq
        %v1512 = vshrl.u32 %v1511, 7
        %v1513 = vsub.s32 %v1510, %v1512
        %v1514 = vrot.slane %v1492, %v1513
        %v1516 = vunpack.c.l.s4 1966171168
        %v1517 = vunpack.c.0.s8 %v1516
        %v1518 = vlaneseq
        %v1519 = vshrl.u32 %v1518, 7
        %v1520 = vsub.s32 %v1517, %v1519
        %v1521 = vrot.slane %v1493, %v1520
        %v1522 = vcombine.high %v1500, %v1500
        %v1523 = vcombine.high %v1507, %v1507
        %v1524 = vcombine.high %v1514, %v1514
        %v1525 = vcombine.high %v1521, %v1521
        %1534 = vst [vmem:[%s206 + $0x6] sm:$0x1] %v1500
        %1535 = vst [vmem:[%s206 + $0xe] sm:$0x1] %v1514
        %1536 = vst [vmem:[%s206 + $0x16] sm:$0x1] %v1522
        %1537 = vst [vmem:[%s206 + $0x1e] sm:$0x1] %v1524
        %1538 = vst [vmem:[%s206 + $0x26] sm:$0x1] %v1507
        %1539 = vst [vmem:[%s206 + $0x2e] sm:$0x1] %v1521
        %1540 = vst [vmem:[%s206 + $0x36] sm:$0x1] %v1523
        %1541 = vst [vmem:[%s206 + $0x3e] sm:$0x1] %v1525
        %v1543 = vcombine.high %v1078, %v1078
        %v1545 = vunpack.c.l.s4 1966171168
        %v1546 = vunpack.c.0.s8 %v1545
        %v1547 = vlaneseq
        %v1548 = vshrl.u32 %v1547, 7
        %v1549 = vsub.s32 %v1546, %v1548
        %v1550 = vrot.slane %v1078, %v1549
        %v1552 = vunpack.c.l.s4 1966171168
        %v1553 = vunpack.c.0.s8 %v1552
        %v1554 = vlaneseq
        %v1555 = vshrl.u32 %v1554, 7
        %v1556 = vsub.s32 %v1553, %v1555
        %v1557 = vrot.slane %v1543, %v1556
        %v1558 = vcombine.high %v1550, %v1550
        %v1559 = vcombine.high %v1557, %v1557
        %v1561 = vunpack.c.l.s4 1966171168
        %v1562 = vunpack.c.0.s8 %v1561
        %v1563 = vlaneseq
        %v1564 = vshrl.u32 %v1563, 7
        %v1565 = vsub.s32 %v1562, %v1564
        %v1566 = vrot.slane %v1550, %v1565
        %v1568 = vunpack.c.l.s4 1966171168
        %v1569 = vunpack.c.0.s8 %v1568
        %v1570 = vlaneseq
        %v1571 = vshrl.u32 %v1570, 7
        %v1572 = vsub.s32 %v1569, %v1571
        %v1573 = vrot.slane %v1557, %v1572
        %v1575 = vunpack.c.l.s4 1966171168
        %v1576 = vunpack.c.0.s8 %v1575
        %v1577 = vlaneseq
        %v1578 = vshrl.u32 %v1577, 7
        %v1579 = vsub.s32 %v1576, %v1578
        %v1580 = vrot.slane %v1558, %v1579
        %v1582 = vunpack.c.l.s4 1966171168
        %v1583 = vunpack.c.0.s8 %v1582
        %v1584 = vlaneseq
        %v1585 = vshrl.u32 %v1584, 7
        %v1586 = vsub.s32 %v1583, %v1585
        %v1587 = vrot.slane %v1559, %v1586
        %v1588 = vcombine.high %v1566, %v1566
        %v1589 = vcombine.high %v1573, %v1573
        %v1590 = vcombine.high %v1580, %v1580
        %v1591 = vcombine.high %v1587, %v1587
        %1600 = vst [vmem:[%s206 + $0x7] sm:$0x1] %v1566
        %1601 = vst [vmem:[%s206 + $0xf] sm:$0x1] %v1580
        %1602 = vst [vmem:[%s206 + $0x17] sm:$0x1] %v1588
        %1603 = vst [vmem:[%s206 + $0x1f] sm:$0x1] %v1590
        %1604 = vst [vmem:[%s206 + $0x27] sm:$0x1] %v1573
        %1605 = vst [vmem:[%s206 + $0x2f] sm:$0x1] %v1587
        %1606 = vst [vmem:[%s206 + $0x37] sm:$0x1] %v1589
        %1607 = vst [vmem:[%s206 + $0x3f] sm:$0x1] %v1591
        %s1608 = sand.u32 %s112, 1
        %s1609 = scalar_lea.sflag [#allocation4], %s1608
        %s1610 = sand.u32 %s112, 1
        %s1611 = smul.addr %s1610, 64
        %s1612 = scalar_lea.vmem [#allocation5], %s1611
        // Predicated region
        $region37: #{tpu_custom_call.1} parent=31 // pred_check
          %p1613 = pneg %p122
        $region38: #{tpu_custom_call.1} parent=31 // pred_check_branch
          %1615 = sbr.rel (%p1613) target = $region40
        $region39: #{tpu_custom_call.1} parent=31 // pred_region
          %s1617 = ssub.s32 1024, 1024
          %1618 = vsyncadd %s1609, %s1617
          %s1619 = smul.addr %s24, 16
          %s1620 = sadd.s32 %s25, %s1619
          %s1621 = smul.addr %s1620, 128
          %s1622 = scalar_lea.hbm %s3, %s1621
          %s1623 = sshll.u32 %s1612, 4
          %s1624 = int_to_ptr.vmem [resolvable:$true] %s1623
          %1629 = dma.vmem_to_hbm [thread:$0]  %s1624, 1024, %s1622, %s1609, 128, 256, 8
        $region40: #{tpu_custom_call.1} parent=31 // pred_fallthru
          _
      $region32: #{tpu_custom_call.1} parent=5 // pred_fallthru
        _
      %p1630 = scmp.le.s32.totalorder 2, %s15
      // Predicated region
      $region41: #{tpu_custom_call.1} parent=5 // pred_check
        %p1631 = pneg %p1630
      $region42: #{tpu_custom_call.1} parent=5 // pred_check_branch
        %1633 = sbr.rel (%p1631) target = $region44
      $region43: #{tpu_custom_call.1} parent=5 // pred_region
        %s1634 = ssub.s32 %s15, 2
        // Predicated region
        $region45: #{tpu_custom_call.1} parent=43 // pred_check
          %p1635 = pneg %p128
        $region46: #{tpu_custom_call.1} parent=43 // pred_check_branch
          %1637 = sbr.rel (%p1635) target = $region48
        $region47: #{tpu_custom_call.1} parent=43 // pred_region
          %s1638 = sand.u32 %s113, 1
          %s1639 = scalar_lea.sflag [#allocation4], %s1638
          %s1640 = sand.u32 %s113, 1
          %s1641 = smul.addr %s1640, 64
          %s1642 = scalar_lea.vmem [#allocation5], %s1641
          %1643 = dma.done %s1639, 1024
        $region48: #{tpu_custom_call.1} parent=43 // pred_fallthru
          _
      $region44: #{tpu_custom_call.1} parent=5 // pred_fallthru
        _
    $region6: #{tpu_custom_call.1} parent=1 // loop_footer
      %s19 = sadd.s32 1, %s15
    $region7: #{tpu_custom_call.1} parent=1 // loop_footer_branch
      %14 = sbr.rel target = $region3
    $region8: #{tpu_custom_call.1} parent=1 // loop_exit
      _
    %1644 = vsyncpa [#allocation3], 1
    %s1645 = scalar_lea.sflag [#allocation3], 1
    %1646 = vsyncpa %s1645, 1
    %1647 = vsyncpa [#allocation4], 1
    %s1648 = scalar_lea.sflag [#allocation4], 1
    %1649 = vsyncpa %s1648, 1

</llo_original>
